<compile_context>
chip_gen: v7x
topology: tpu7x:2x2x1
jax: 0.10.0
libtpu: 0.0.40
codegen_flags: <defaults>
</compile_context>

<pallas_src>
import jax
import jax.numpy as jnp
from jax import lax
from jax.experimental import pallas as pl
from jax.experimental.pallas import tpu as pltpu

# ---------------------------------------------------------------------------
# Model hyper-parameters (small, ViT-tiny-ish)
# ---------------------------------------------------------------------------
B = 2           # batch
C = 3           # image channels
H = W = 16      # spatial
P = 4           # patch size
N = (H // P) * (W // P)       # 16 tokens per image
BN = B * N                    # 32 tokens total (batch fused)
PATCH_DIM = C * P * P         # 48
D = 32                        # embedding dim (fixed-size output vector)
NUM_HEADS = 2
HEAD_DIM = D // NUM_HEADS     # 16
MLP_DIM = 4 * D               # 128
EPS = 1e-5

# The narrow-parameter column groups in the packed weight array are 32 lanes
# wide; this layout requires D == 32 and BN == 32 (B*N tokens).
assert D == 32 and BN == 32, "packing layout assumes D == 32 and B*N == 32"

# ------------------------- packed parameter layout (R128 x 128) ------------
# Full-width rows (consumed whole, free sublane slices):
OFF_WPRJ = 0                    # (D, 128)  [q0ext*s | q1ext*s | Wk | Wv]
OFF_W1 = OFF_WPRJ + D           # 32  (D, MLP_DIM)  MLP up-proj
OFF_W2T = OFF_W1 + D            # 64  (D, MLP_DIM)  MLP down-proj, transposed
OFF_B1 = OFF_W2T + D            # 96  (1, MLP_DIM)
# Narrow 4x32-lane column group (8-aligned start):
OFF_G = 104
LANE_C0, LANE_C1, LANE_C2, LANE_C3 = 0, 32, 64, 96
OFF_MASK = OFF_G                # col0: (2*BN, BN) image block-diag mask x heads
OFF_POS = OFF_G                 # col1: (BN, D) positional emb (batch-tiled)
OFF_WO0 = OFF_G + BN            # col1: (D, D) head-0 row-masked W_O
OFF_WO1 = OFF_G                 # col2: (D, D) head-1 row-masked W_O
OFF_LN = OFF_G + D              # col2: (8, D) ln1_g/b, ln2_g/b, lnf_g/b, b2, 0
OFF_POOL = OFF_LN + 8           # col2: (B, BN) mean-pool matrix (1/N entries)
OFF_WPE = OFF_G                 # col3: (PATCH_DIM, D) patch-embed weight
R128 = OFF_G + 2 * BN           # 168 rows total

LN1_G, LN1_B, LN2_G, LN2_B, LNF_G, LNF_B, B2_ROW = 0, 1, 2, 3, 4, 5, 6


# ---------------------------------------------------------------------------
# Kernel helpers
# ---------------------------------------------------------------------------
def _layernorm(x, gamma, beta):
    # variance as E[x^2] - mu^2: the two cross-lane reductions are independent
    mu = jnp.mean(x, axis=-1, keepdims=True)
    ex2 = jnp.mean(x * x, axis=-1, keepdims=True)
    var = ex2 - mu * mu
    return (x - mu) * lax.rsqrt(var + EPS) * gamma + beta


def _gelu_tanh(x):
    # tanh approximation of GELU (EUP-friendly)
    c = 0.7978845608028654  # sqrt(2/pi)
    return 0.5 * x * (1.0 + jnp.tanh(c * (x + 0.044715 * x * x * x)))


# ---------------------------------------------------------------------------
# Pallas kernel: full encoder forward, batch fused (single grid step)
# ---------------------------------------------------------------------------
def encoder_kernel(patches_ref, pack_ref, out_ref):
    x = patches_ref[...]                                           # (BN, PATCH_DIM)

    # ---- unpack parameters --------------------------------------------------
    w_prj = pack_ref[OFF_WPRJ:OFF_WPRJ + D, :]                     # (D, 128)
    w1 = pack_ref[OFF_W1:OFF_W1 + D, :]                            # (D, MLP_DIM)
    w2t = pack_ref[OFF_W2T:OFF_W2T + D, :]                         # (D, MLP_DIM)
    b1 = pack_ref[OFF_B1:OFF_B1 + 1, :]                            # (1, MLP_DIM)

    mask = pack_ref[OFF_MASK:OFF_MASK + 2 * BN, LANE_C0:LANE_C0 + BN]   # (2BN, BN)
    pos = pack_ref[OFF_POS:OFF_POS + BN, LANE_C1:LANE_C1 + D]           # (BN, D)
    wo0 = pack_ref[OFF_WO0:OFF_WO0 + D, LANE_C1:LANE_C1 + D]            # (D, D)
    wo1 = pack_ref[OFF_WO1:OFF_WO1 + D, LANE_C2:LANE_C2 + D]            # (D, D)
    ln = pack_ref[OFF_LN:OFF_LN + 8, LANE_C2:LANE_C2 + D]               # (8, D)
    pool = pack_ref[OFF_POOL:OFF_POOL + B, LANE_C2:LANE_C2 + BN]        # (B, BN)
    w_pe = pack_ref[OFF_WPE:OFF_WPE + PATCH_DIM, LANE_C3:LANE_C3 + D]   # (PATCH_DIM, D)

    def ln_row(r):
        return ln[r:r + 1, :]                                      # (1, D)

    # ---- patch embedding + positional embedding -----------------------------
    h = jnp.dot(x, w_pe, preferred_element_type=jnp.float32) + pos      # (BN, D)

    # ---- transformer block: attention (heads stacked on sublanes) -----------
    hn = _layernorm(h, ln_row(LN1_G), ln_row(LN1_B))
    prj = jnp.dot(hn, w_prj, preferred_element_type=jnp.float32)        # (BN, 128)
    # Q_ext rows 0:BN = [q0*s | 0], rows BN:2BN = [0 | q1*s]; k, v full width D.
    q_ext = jnp.concatenate([prj[:, 0:D], prj[:, D:2 * D]], axis=0)     # (2BN, D)
    k = prj[:, 2 * D:3 * D]                                             # (BN, D)
    v = prj[:, 3 * D:4 * D]                                             # (BN, D)

    # one score matmul (zeroed halves in Q_ext keep the heads separate)
    s = lax.dot_general(q_ext, k, (((1,), (1,)), ((), ())),
                        preferred_element_type=jnp.float32) + mask      # (2BN, BN)
    s_max = jnp.max(s, axis=-1, keepdims=True)
    e = jnp.exp(s - s_max)
    p = e * pl.reciprocal(jnp.sum(e, axis=-1, keepdims=True), approx=True)
    o = jnp.dot(p, v, preferred_element_type=jnp.float32)               # (2BN, D)
    # per-head output projection: free sublane slices + row-masked W_O halves
    attn = (jnp.dot(o[0:BN], wo0, preferred_element_type=jnp.float32)
            + jnp.dot(o[BN:2 * BN], wo1, preferred_element_type=jnp.float32))
    h = h + attn

    # ---- transformer block: MLP ----------------------------------------------
    hn = _layernorm(h, ln_row(LN2_G), ln_row(LN2_B))
    m = jnp.dot(hn, w1, preferred_element_type=jnp.float32) + b1        # (BN, MLP_DIM)
    m = _gelu_tanh(m)
    # down-projection with transposed weight (contract trailing dims)
    dn = lax.dot_general(m, w2t, (((1,), (1,)), ((), ())),
                         preferred_element_type=jnp.float32)            # (BN, D)
    h = h + dn + ln_row(B2_ROW)

    # ---- final LN + mean pool over tokens (as a matmul) ----------------------
    hf = _layernorm(h, ln_row(LNF_G), ln_row(LNF_B))                     # (BN, D)
    out_ref[...] = jnp.dot(pool, hf, preferred_element_type=jnp.float32)  # (B, D)


# ---------------------------------------------------------------------------
# One-time host-side parameter packing (lane-dense, scale/mask folding)
# ---------------------------------------------------------------------------
def pack_params(params):
    scale = 1.0 / float(HEAD_DIM) ** 0.5
    pk = jnp.zeros((R128, 128), jnp.float32)

    # fused attention projection: [Wq_h0*s | 0] [0 | Wq_h1*s] [Wk] [Wv]
    wq = (params["wq"] * scale).astype(jnp.float32)
    w_prj = jnp.zeros((D, 128), jnp.float32)
    w_prj = w_prj.at[:, 0:HEAD_DIM].set(wq[:, 0:HEAD_DIM])
    w_prj = w_prj.at[:, D + HEAD_DIM:2 * D].set(wq[:, HEAD_DIM:D])
    w_prj = w_prj.at[:, 2 * D:3 * D].set(params["wk"].astype(jnp.float32))
    w_prj = w_prj.at[:, 3 * D:4 * D].set(params["wv"].astype(jnp.float32))
    pk = pk.at[OFF_WPRJ:OFF_WPRJ + D, :].set(w_prj)

    pk = pk.at[OFF_W1:OFF_W1 + D, :].set(params["w1"].astype(jnp.float32))
    pk = pk.at[OFF_W2T:OFF_W2T + D, :].set(params["w2"].astype(jnp.float32).T)
    pk = pk.at[OFF_B1, :].set(params["b1"].astype(jnp.float32)[0])

    # image block-diagonal attention mask, tiled over the 2 head sublane blocks
    img_id = jnp.repeat(jnp.arange(B), N)                            # (BN,)
    m = jnp.where(img_id[:, None] == img_id[None, :], 0.0, -1e30).astype(jnp.float32)
    mask_ext = jnp.concatenate([m, m], axis=0)                       # (2BN, BN)
    pk = pk.at[OFF_MASK:OFF_MASK + 2 * BN, LANE_C0:LANE_C0 + BN].set(mask_ext)

    pos_bn = jnp.tile(params["pos"].astype(jnp.float32), (B, 1))     # (BN, D)
    pk = pk.at[OFF_POS:OFF_POS + BN, LANE_C1:LANE_C1 + D].set(pos_bn)

    # row-masked per-head output projections
    wo = params["wo"].astype(jnp.float32)
    wo0 = jnp.zeros((D, D), jnp.float32).at[0:HEAD_DIM, :].set(wo[0:HEAD_DIM, :])
    wo1 = jnp.zeros((D, D), jnp.float32).at[HEAD_DIM:D, :].set(wo[HEAD_DIM:D, :])
    pk = pk.at[OFF_WO0:OFF_WO0 + D, LANE_C1:LANE_C1 + D].set(wo0)
    pk = pk.at[OFF_WO1:OFF_WO1 + D, LANE_C2:LANE_C2 + D].set(wo1)

    ln_rows = jnp.concatenate([
        params["ln1_g"], params["ln1_b"],
        params["ln2_g"], params["ln2_b"],
        params["lnf_g"], params["lnf_b"],
        params["b2"],
        jnp.zeros((1, D), jnp.float32),
    ], axis=0).astype(jnp.float32)                                   # (8, D)
    pk = pk.at[OFF_LN:OFF_LN + 8, LANE_C2:LANE_C2 + D].set(ln_rows)

    pool = jnp.zeros((B, BN), jnp.float32)
    for b in range(B):
        pool = pool.at[b, b * N:(b + 1) * N].set(1.0 / N)
    pk = pk.at[OFF_POOL:OFF_POOL + B, LANE_C2:LANE_C2 + BN].set(pool)

    pk = pk.at[OFF_WPE:OFF_WPE + PATCH_DIM, LANE_C3:LANE_C3 + D].set(
        params["w_pe"].astype(jnp.float32))
    return pk


# ---------------------------------------------------------------------------
# Wrapper: NCHW images -> patch tokens -> single Pallas call
# ---------------------------------------------------------------------------
@jax.jit
def image_encoder_forward(x_nchw, pack):
    b, c, h, w = x_nchw.shape
    # NCHW -> (B*N, C*P*P) patch tokens (same as Conv2d(kernel=P, stride=P)).
    # TODO(synk): this transpose stays host-side (see module docstring).
    xp = x_nchw.reshape(b, c, h // P, P, w // P, P)
    xp = jnp.transpose(xp, (0, 2, 4, 1, 3, 5))                  # (B, H/P, W/P, C, P, P)
    patches = xp.reshape(b * N, PATCH_DIM).astype(jnp.float32)  # (BN, PATCH_DIM)

    out = pl.pallas_call(
        encoder_kernel,
        out_shape=jax.ShapeDtypeStruct((B, D), jnp.float32),
        grid_spec=pltpu.PrefetchScalarGridSpec(
            num_scalar_prefetch=0,
            grid=(1,),  # batch fused into one step at these tiny sizes
            in_specs=[
                pl.BlockSpec((BN, PATCH_DIM), lambda i: (0, 0)),
                pl.BlockSpec((R128, 128), lambda i: (0, 0)),
            ],
            out_specs=pl.BlockSpec((B, D), lambda i: (0, 0)),
        ),
        compiler_params=pltpu.CompilerParams(
            dimension_semantics=("arbitrary",)),
    )(patches, pack)
    return out                                                  # (B, D)


# ---------------------------------------------------------------------------
# Deterministic parameter initialization
# ---------------------------------------------------------------------------
def init_params(key):
    ks = jax.random.split(key, 8)

    def nrm(k, shape, scale):
        return (scale * jax.random.normal(k, shape)).astype(jnp.float32)

    return {
        "w_pe": nrm(ks[0], (PATCH_DIM, D), 0.02),
        "pos":  nrm(ks[1], (N, D), 0.02),
        "ln1_g": jnp.ones((1, D), jnp.float32),
        "ln1_b": jnp.zeros((1, D), jnp.float32),
        "wq": nrm(ks[2], (D, D), 0.02),
        "wk": nrm(ks[3], (D, D), 0.02),
        "wv": nrm(ks[4], (D, D), 0.02),
        "wo": nrm(ks[5], (D, D), 0.02),
        "ln2_g": jnp.ones((1, D), jnp.float32),
        "ln2_b": jnp.zeros((1, D), jnp.float32),
        "w1": nrm(ks[6], (D, MLP_DIM), 0.02),
        "b1": jnp.zeros((1, MLP_DIM), jnp.float32),
        "w2": nrm(ks[7], (MLP_DIM, D), 0.02),
        "b2": jnp.zeros((1, D), jnp.float32),
        "lnf_g": jnp.ones((1, D), jnp.float32),
        "lnf_b": jnp.zeros((1, D), jnp.float32),
    }


# ---------------------------------------------------------------------------
# Pure-JAX reference (unfused, per-image, per-head) used as a correctness check
# ---------------------------------------------------------------------------
def encoder_reference(x_nchw, params):
    b = x_nchw.shape[0]
    xp = x_nchw.reshape(b, C, H // P, P, W // P, P)
    xp = jnp.transpose(xp, (0, 2, 4, 1, 3, 5)).reshape(b, N, PATCH_DIM)

    def ln(x, g, bb):
        mu = jnp.mean(x, axis=-1, keepdims=True)
        var = jnp.mean((x - mu) ** 2, axis=-1, keepdims=True)
        return (x - mu) * lax.rsqrt(var + EPS) * g + bb

    h = jnp.einsum("bnp,pd->bnd", xp, params["w_pe"]) + params["pos"]
    hn = ln(h, params["ln1_g"], params["ln1_b"])
    q = hn @ params["wq"]
    k = hn @ params["wk"]
    v = hn @ params["wv"]
    scale = 1.0 / float(HEAD_DIM) ** 0.5
    outs = []
    for hh in range(NUM_HEADS):
        sl = slice(hh * HEAD_DIM, (hh + 1) * HEAD_DIM)
        s = jnp.einsum("bnd,bmd->bnm", q[..., sl], k[..., sl]) * scale
        p = jax.nn.softmax(s, axis=-1)
        outs.append(jnp.einsum("bnm,bmd->bnd", p, v[..., sl]))
    h = h + jnp.concatenate(outs, axis=-1) @ params["wo"]
    hn = ln(h, params["ln2_g"], params["ln2_b"])
    m = _gelu_tanh(hn @ params["w1"] + params["b1"])
    h = h + m @ params["w2"] + params["b2"]
    hf = ln(h, params["lnf_g"], params["lnf_b"])
    return jnp.mean(hf, axis=1)                                 # (B, D)


if __name__ == "__main__":
    key = jax.random.PRNGKey(0)
    k_img, k_par = jax.random.split(key)

    # PyTorch-style NCHW image batch
    x = jax.random.normal(k_img, (B, C, H, W), dtype=jnp.float32)
    params = init_params(k_par)

    pack = pack_params(params)      # host-side, once

    out = image_encoder_forward(x, pack)
    out = jax.block_until_ready(out)

    assert out.shape == (B, D), out.shape
    assert bool(jnp.all(jnp.isfinite(out)))

    ref = encoder_reference(x, params)
    assert bool(jnp.allclose(out, ref, atol=1e-2, rtol=1e-2)), (
        float(jnp.max(jnp.abs(out - ref))))

    print("KERNEL_OK")
</pallas_src>

<mosaic_0001>
module attributes {stable_mosaic.version = 11 : i64} {
  func.func @encoder_kernel(%arg0: i32, %arg1: memref<32x48xf32, #tpu.memory_space<vmem>>, %arg2: memref<168x128xf32, #tpu.memory_space<vmem>>, %arg3: memref<2x32xf32, #tpu.memory_space<vmem>>) attributes {dimension_semantics = [#tpu.dimension_semantics<arbitrary>], iteration_bounds = array<i64: 1>, scalar_prefetch = 0 : i64, scratch_operands = 0 : i64, tpu.core_type = #tpu.core_type<tc>, window_params = [{pipeline_mode = #tpu.pipeline_mode<synchronous>, transform_indices = @transform_0, window_bounds = array<i64: 32, 48>}, {pipeline_mode = #tpu.pipeline_mode<synchronous>, transform_indices = @transform_1, window_bounds = array<i64: 168, 128>}, {pipeline_mode = #tpu.pipeline_mode<synchronous>, transform_indices = @transform_2, window_bounds = array<i64: 2, 32>}]} {
    %c0 = arith.constant 0 : index
    %c0_0 = arith.constant 0 : index
    %0 = vector.load %arg1[%c0, %c0_0] : memref<32x48xf32, #tpu.memory_space<vmem>>, vector<32x48xf32>
    %c0_1 = arith.constant 0 : index
    %c0_2 = arith.constant 0 : index
    %1 = vector.load %arg2[%c0_1, %c0_2] : memref<168x128xf32, #tpu.memory_space<vmem>>, vector<32x128xf32>
    %c32 = arith.constant 32 : index
    %c0_3 = arith.constant 0 : index
    %2 = vector.load %arg2[%c32, %c0_3] : memref<168x128xf32, #tpu.memory_space<vmem>>, vector<32x128xf32>
    %c64 = arith.constant 64 : index
    %c0_4 = arith.constant 0 : index
    %3 = vector.load %arg2[%c64, %c0_4] : memref<168x128xf32, #tpu.memory_space<vmem>>, vector<32x128xf32>
    %c96 = arith.constant 96 : index
    %c0_5 = arith.constant 0 : index
    %4 = vector.load %arg2[%c96, %c0_5] : memref<168x128xf32, #tpu.memory_space<vmem>>, vector<1x128xf32>
    %c104 = arith.constant 104 : index
    %c0_6 = arith.constant 0 : index
    %5 = vector.load %arg2[%c104, %c0_6] : memref<168x128xf32, #tpu.memory_space<vmem>>, vector<64x32xf32>
    %c104_7 = arith.constant 104 : index
    %c32_8 = arith.constant 32 : index
    %6 = vector.load %arg2[%c104_7, %c32_8] : memref<168x128xf32, #tpu.memory_space<vmem>>, vector<32x32xf32>
    %c136 = arith.constant 136 : index
    %c32_9 = arith.constant 32 : index
    %7 = vector.load %arg2[%c136, %c32_9] : memref<168x128xf32, #tpu.memory_space<vmem>>, vector<32x32xf32>
    %c104_10 = arith.constant 104 : index
    %c64_11 = arith.constant 64 : index
    %8 = vector.load %arg2[%c104_10, %c64_11] : memref<168x128xf32, #tpu.memory_space<vmem>>, vector<32x32xf32>
    %c136_12 = arith.constant 136 : index
    %c64_13 = arith.constant 64 : index
    %9 = vector.load %arg2[%c136_12, %c64_13] : memref<168x128xf32, #tpu.memory_space<vmem>>, vector<8x32xf32>
    %c144 = arith.constant 144 : index
    %c64_14 = arith.constant 64 : index
    %10 = vector.load %arg2[%c144, %c64_14] : memref<168x128xf32, #tpu.memory_space<vmem>>, vector<2x32xf32>
    %c104_15 = arith.constant 104 : index
    %c96_16 = arith.constant 96 : index
    %11 = vector.load %arg2[%c104_15, %c96_16] : memref<168x128xf32, #tpu.memory_space<vmem>>, vector<48x32xf32>
    %cst = arith.constant dense<0.000000e+00> : vector<32x32xf32>
    %12 = tpu.matmul %0, %11, %cst {dimension_numbers = #tpu.dot_dimension_numbers<[1], [0], [0], [1], [0, 0, 1, 1], [], []>} : vector<32x48xf32>, vector<48x32xf32>, vector<32x32xf32> -> vector<32x32xf32>
    %13 = arith.addf %12, %6 : vector<32x32xf32>
    %14 = vector.extract_strided_slice %9 {offsets = [0, 0], sizes = [1, 32], strides = [1, 1]} : vector<8x32xf32> to vector<1x32xf32>
    %15 = vector.extract_strided_slice %9 {offsets = [1, 0], sizes = [1, 32], strides = [1, 1]} : vector<8x32xf32> to vector<1x32xf32>
    %cst_17 = arith.constant dense<0.000000e+00> : vector<32xf32>
    %16 = vector.multi_reduction <add>, %13, %cst_17 [1] : vector<32x32xf32> to vector<32xf32>
    %17 = vector.shape_cast %16 : vector<32xf32> to vector<32x1xf32>
    %cst_18 = arith.constant 3.200000e+01 : f32
    %18 = vector.broadcast %cst_18 : f32 to vector<32x1xf32>
    %19 = arith.divf %17, %18 : vector<32x1xf32>
    %20 = arith.mulf %13, %13 : vector<32x32xf32>
    %cst_19 = arith.constant dense<0.000000e+00> : vector<32xf32>
    %21 = vector.multi_reduction <add>, %20, %cst_19 [1] : vector<32x32xf32> to vector<32xf32>
    %22 = vector.shape_cast %21 : vector<32xf32> to vector<32x1xf32>
    %cst_20 = arith.constant 3.200000e+01 : f32
    %23 = vector.broadcast %cst_20 : f32 to vector<32x1xf32>
    %24 = arith.divf %22, %23 : vector<32x1xf32>
    %25 = arith.mulf %19, %19 : vector<32x1xf32>
    %26 = arith.subf %24, %25 : vector<32x1xf32>
    %27 = vector.broadcast %19 : vector<32x1xf32> to vector<32x32xf32>
    %28 = arith.subf %13, %27 : vector<32x32xf32>
    %cst_21 = arith.constant 9.99999974E-6 : f32
    %29 = vector.broadcast %cst_21 : f32 to vector<32x1xf32>
    %30 = arith.addf %26, %29 : vector<32x1xf32>
    %31 = math.rsqrt %30 : vector<32x1xf32>
    %32 = vector.broadcast %31 : vector<32x1xf32> to vector<32x32xf32>
    %33 = arith.mulf %28, %32 : vector<32x32xf32>
    %34 = vector.broadcast %14 : vector<1x32xf32> to vector<32x32xf32>
    %35 = arith.mulf %33, %34 : vector<32x32xf32>
    %36 = vector.broadcast %15 : vector<1x32xf32> to vector<32x32xf32>
    %37 = arith.addf %35, %36 : vector<32x32xf32>
    %cst_22 = arith.constant dense<0.000000e+00> : vector<32x128xf32>
    %38 = tpu.matmul %37, %1, %cst_22 {dimension_numbers = #tpu.dot_dimension_numbers<[1], [0], [0], [1], [0, 0, 1, 1], [], []>} : vector<32x32xf32>, vector<32x128xf32>, vector<32x128xf32> -> vector<32x128xf32>
    %39 = vector.extract_strided_slice %38 {offsets = [0, 0], sizes = [32, 32], strides = [1, 1]} : vector<32x128xf32> to vector<32x32xf32>
    %40 = vector.extract_strided_slice %38 {offsets = [0, 32], sizes = [32, 32], strides = [1, 1]} : vector<32x128xf32> to vector<32x32xf32>
    %41 = tpu.concatenate %39, %40 in 0 : vector<32x32xf32>, vector<32x32xf32> -> vector<64x32xf32>
    %42 = vector.extract_strided_slice %38 {offsets = [0, 64], sizes = [32, 32], strides = [1, 1]} : vector<32x128xf32> to vector<32x32xf32>
    %43 = vector.extract_strided_slice %38 {offsets = [0, 96], sizes = [32, 32], strides = [1, 1]} : vector<32x128xf32> to vector<32x32xf32>
    %cst_23 = arith.constant dense<0.000000e+00> : vector<64x32xf32>
    %44 = tpu.matmul %41, %42, %cst_23 {dimension_numbers = #tpu.dot_dimension_numbers<[1], [1], [0], [0], [0, 0, 1, 0], [], []>} : vector<64x32xf32>, vector<32x32xf32>, vector<64x32xf32> -> vector<64x32xf32>
    %45 = arith.addf %44, %5 : vector<64x32xf32>
    %cst_24 = arith.constant dense<0xFF800000> : vector<64xf32>
    %46 = vector.multi_reduction <maximumf>, %45, %cst_24 [1] : vector<64x32xf32> to vector<64xf32>
    %47 = vector.shape_cast %46 : vector<64xf32> to vector<64x1xf32>
    %48 = vector.broadcast %47 : vector<64x1xf32> to vector<64x32xf32>
    %49 = arith.subf %45, %48 : vector<64x32xf32>
    %50 = math.exp %49 : vector<64x32xf32>
    %cst_25 = arith.constant dense<0.000000e+00> : vector<64xf32>
    %51 = vector.multi_reduction <add>, %50, %cst_25 [1] : vector<64x32xf32> to vector<64xf32>
    %52 = vector.shape_cast %51 : vector<64xf32> to vector<64x1xf32>
    %53 = tpu.reciprocal %52 {approx = true} : vector<64x1xf32> -> vector<64x1xf32>
    %54 = vector.broadcast %53 : vector<64x1xf32> to vector<64x32xf32>
    %55 = arith.mulf %50, %54 : vector<64x32xf32>
    %cst_26 = arith.constant dense<0.000000e+00> : vector<64x32xf32>
    %56 = tpu.matmul %55, %43, %cst_26 {dimension_numbers = #tpu.dot_dimension_numbers<[1], [0], [0], [1], [0, 0, 1, 1], [], []>} : vector<64x32xf32>, vector<32x32xf32>, vector<64x32xf32> -> vector<64x32xf32>
    %57 = vector.extract_strided_slice %56 {offsets = [0, 0], sizes = [32, 32], strides = [1, 1]} : vector<64x32xf32> to vector<32x32xf32>
    %cst_27 = arith.constant dense<0.000000e+00> : vector<32x32xf32>
    %58 = tpu.matmul %57, %7, %cst_27 {dimension_numbers = #tpu.dot_dimension_numbers<[1], [0], [0], [1], [0, 0, 1, 1], [], []>} : vector<32x32xf32>, vector<32x32xf32>, vector<32x32xf32> -> vector<32x32xf32>
    %59 = vector.extract_strided_slice %56 {offsets = [32, 0], sizes = [32, 32], strides = [1, 1]} : vector<64x32xf32> to vector<32x32xf32>
    %cst_28 = arith.constant dense<0.000000e+00> : vector<32x32xf32>
    %60 = tpu.matmul %59, %8, %cst_28 {dimension_numbers = #tpu.dot_dimension_numbers<[1], [0], [0], [1], [0, 0, 1, 1], [], []>} : vector<32x32xf32>, vector<32x32xf32>, vector<32x32xf32> -> vector<32x32xf32>
    %61 = arith.addf %58, %60 : vector<32x32xf32>
    %62 = arith.addf %13, %61 : vector<32x32xf32>
    %63 = vector.extract_strided_slice %9 {offsets = [2, 0], sizes = [1, 32], strides = [1, 1]} : vector<8x32xf32> to vector<1x32xf32>
    %64 = vector.extract_strided_slice %9 {offsets = [3, 0], sizes = [1, 32], strides = [1, 1]} : vector<8x32xf32> to vector<1x32xf32>
    %cst_29 = arith.constant dense<0.000000e+00> : vector<32xf32>
    %65 = vector.multi_reduction <add>, %62, %cst_29 [1] : vector<32x32xf32> to vector<32xf32>
    %66 = vector.shape_cast %65 : vector<32xf32> to vector<32x1xf32>
    %cst_30 = arith.constant 3.200000e+01 : f32
    %67 = vector.broadcast %cst_30 : f32 to vector<32x1xf32>
    %68 = arith.divf %66, %67 : vector<32x1xf32>
    %69 = arith.mulf %62, %62 : vector<32x32xf32>
    %cst_31 = arith.constant dense<0.000000e+00> : vector<32xf32>
    %70 = vector.multi_reduction <add>, %69, %cst_31 [1] : vector<32x32xf32> to vector<32xf32>
    %71 = vector.shape_cast %70 : vector<32xf32> to vector<32x1xf32>
    %cst_32 = arith.constant 3.200000e+01 : f32
    %72 = vector.broadcast %cst_32 : f32 to vector<32x1xf32>
    %73 = arith.divf %71, %72 : vector<32x1xf32>
    %74 = arith.mulf %68, %68 : vector<32x1xf32>
    %75 = arith.subf %73, %74 : vector<32x1xf32>
    %76 = vector.broadcast %68 : vector<32x1xf32> to vector<32x32xf32>
    %77 = arith.subf %62, %76 : vector<32x32xf32>
    %cst_33 = arith.constant 9.99999974E-6 : f32
    %78 = vector.broadcast %cst_33 : f32 to vector<32x1xf32>
    %79 = arith.addf %75, %78 : vector<32x1xf32>
    %80 = math.rsqrt %79 : vector<32x1xf32>
    %81 = vector.broadcast %80 : vector<32x1xf32> to vector<32x32xf32>
    %82 = arith.mulf %77, %81 : vector<32x32xf32>
    %83 = vector.broadcast %63 : vector<1x32xf32> to vector<32x32xf32>
    %84 = arith.mulf %82, %83 : vector<32x32xf32>
    %85 = vector.broadcast %64 : vector<1x32xf32> to vector<32x32xf32>
    %86 = arith.addf %84, %85 : vector<32x32xf32>
    %cst_34 = arith.constant dense<0.000000e+00> : vector<32x128xf32>
    %87 = tpu.matmul %86, %2, %cst_34 {dimension_numbers = #tpu.dot_dimension_numbers<[1], [0], [0], [1], [0, 0, 1, 1], [], []>} : vector<32x32xf32>, vector<32x128xf32>, vector<32x128xf32> -> vector<32x128xf32>
    %88 = vector.broadcast %4 : vector<1x128xf32> to vector<32x128xf32>
    %89 = arith.addf %87, %88 : vector<32x128xf32>
    %cst_35 = arith.constant 5.000000e-01 : f32
    %90 = vector.broadcast %cst_35 : f32 to vector<32x128xf32>
    %91 = arith.mulf %90, %89 : vector<32x128xf32>
    %cst_36 = arith.constant 4.471500e-02 : f32
    %92 = vector.broadcast %cst_36 : f32 to vector<32x128xf32>
    %93 = arith.mulf %92, %89 : vector<32x128xf32>
    %94 = arith.mulf %93, %89 : vector<32x128xf32>
    %95 = arith.mulf %94, %89 : vector<32x128xf32>
    %96 = arith.addf %89, %95 : vector<32x128xf32>
    %cst_37 = arith.constant 0.797884583 : f32
    %97 = vector.broadcast %cst_37 : f32 to vector<32x128xf32>
    %98 = arith.mulf %97, %96 : vector<32x128xf32>
    %99 = math.tanh %98 : vector<32x128xf32>
    %cst_38 = arith.constant 1.000000e+00 : f32
    %100 = vector.broadcast %cst_38 : f32 to vector<32x128xf32>
    %101 = arith.addf %100, %99 : vector<32x128xf32>
    %102 = arith.mulf %91, %101 : vector<32x128xf32>
    %cst_39 = arith.constant dense<0.000000e+00> : vector<32x32xf32>
    %103 = tpu.matmul %102, %3, %cst_39 {dimension_numbers = #tpu.dot_dimension_numbers<[1], [1], [0], [0], [0, 0, 1, 0], [], []>} : vector<32x128xf32>, vector<32x128xf32>, vector<32x32xf32> -> vector<32x32xf32>
    %104 = arith.addf %62, %103 : vector<32x32xf32>
    %105 = vector.extract_strided_slice %9 {offsets = [6, 0], sizes = [1, 32], strides = [1, 1]} : vector<8x32xf32> to vector<1x32xf32>
    %106 = vector.broadcast %105 : vector<1x32xf32> to vector<32x32xf32>
    %107 = arith.addf %104, %106 : vector<32x32xf32>
    %108 = vector.extract_strided_slice %9 {offsets = [4, 0], sizes = [1, 32], strides = [1, 1]} : vector<8x32xf32> to vector<1x32xf32>
    %109 = vector.extract_strided_slice %9 {offsets = [5, 0], sizes = [1, 32], strides = [1, 1]} : vector<8x32xf32> to vector<1x32xf32>
    %cst_40 = arith.constant dense<0.000000e+00> : vector<32xf32>
    %110 = vector.multi_reduction <add>, %107, %cst_40 [1] : vector<32x32xf32> to vector<32xf32>
    %111 = vector.shape_cast %110 : vector<32xf32> to vector<32x1xf32>
    %cst_41 = arith.constant 3.200000e+01 : f32
    %112 = vector.broadcast %cst_41 : f32 to vector<32x1xf32>
    %113 = arith.divf %111, %112 : vector<32x1xf32>
    %114 = arith.mulf %107, %107 : vector<32x32xf32>
    %cst_42 = arith.constant dense<0.000000e+00> : vector<32xf32>
    %115 = vector.multi_reduction <add>, %114, %cst_42 [1] : vector<32x32xf32> to vector<32xf32>
    %116 = vector.shape_cast %115 : vector<32xf32> to vector<32x1xf32>
    %cst_43 = arith.constant 3.200000e+01 : f32
    %117 = vector.broadcast %cst_43 : f32 to vector<32x1xf32>
    %118 = arith.divf %116, %117 : vector<32x1xf32>
    %119 = arith.mulf %113, %113 : vector<32x1xf32>
    %120 = arith.subf %118, %119 : vector<32x1xf32>
    %121 = vector.broadcast %113 : vector<32x1xf32> to vector<32x32xf32>
    %122 = arith.subf %107, %121 : vector<32x32xf32>
    %cst_44 = arith.constant 9.99999974E-6 : f32
    %123 = vector.broadcast %cst_44 : f32 to vector<32x1xf32>
    %124 = arith.addf %120, %123 : vector<32x1xf32>
    %125 = math.rsqrt %124 : vector<32x1xf32>
    %126 = vector.broadcast %125 : vector<32x1xf32> to vector<32x32xf32>
    %127 = arith.mulf %122, %126 : vector<32x32xf32>
    %128 = vector.broadcast %108 : vector<1x32xf32> to vector<32x32xf32>
    %129 = arith.mulf %127, %128 : vector<32x32xf32>
    %130 = vector.broadcast %109 : vector<1x32xf32> to vector<32x32xf32>
    %131 = arith.addf %129, %130 : vector<32x32xf32>
    %cst_45 = arith.constant dense<0.000000e+00> : vector<2x32xf32>
    %132 = tpu.matmul %10, %131, %cst_45 {dimension_numbers = #tpu.dot_dimension_numbers<[1], [0], [0], [1], [0, 0, 1, 1], [], []>} : vector<2x32xf32>, vector<32x32xf32>, vector<2x32xf32> -> vector<2x32xf32>
    %c0_46 = arith.constant 0 : index
    %c0_47 = arith.constant 0 : index
    %133 = vector.load %arg3[%c0_46, %c0_47] : memref<2x32xf32, #tpu.memory_space<vmem>>, vector<2x32xf32>
    tpu.vector_store %arg3[%c0_46, %c0_47], %132 {strides = array<i32>} : memref<2x32xf32, #tpu.memory_space<vmem>>, vector<2x32xf32>,
    return
  }
  func.func @transform_0(%arg0: i32) -> (i32, i32) {
    %c0_i32 = arith.constant 0 : i32
    %c0_i32_0 = arith.constant 0 : i32
    %c0_i32_1 = arith.constant 0 : i32
    return %c0_i32, %c0_i32_0 : i32, i32
  }
  func.func @transform_1(%arg0: i32) -> (i32, i32) {
    %c0_i32 = arith.constant 0 : i32
    %c0_i32_0 = arith.constant 0 : i32
    %c0_i32_1 = arith.constant 0 : i32
    return %c0_i32, %c0_i32_0 : i32, i32
  }
  func.func @transform_2(%arg0: i32) -> (i32, i32) {
    %c0_i32 = arith.constant 0 : i32
    %c0_i32_0 = arith.constant 0 : i32
    %c0_i32_1 = arith.constant 0 : i32
    return %c0_i32, %c0_i32_0 : i32, i32
  }
}

</mosaic_0001>

<llo_original>
// kernel: image_encoder_forward.1
$region0: #{image_encoder_forward.1}
  #allocation0 [shape = 'u32[]', space=smem, size = 0x4, offset = 0x4, fixed_abs, tag = 'smem constant byte address 0x4 - core index']
  #allocation1 [shape = 'u32[144,128]{1,0:T(1,128)}', space=vmem, size = 0x12000, scoped, tag = 'internal scratch']
  %s0 = inlined_call_operand.vmem [shape: f32[32,48], index: 0, kind: input, shape index: {}]
  %s1 = inlined_call_operand.vmem [shape: f32[168,128], index: 1, kind: input, shape index: {}]
  %s2 = inlined_call_operand.hbm [shape: f32[2,32], index: 2, kind: output, shape index: {}]
  %s3 = sld [smem:[#allocation0]]
  $region18: #{image_encoder_forward.1} parent=0
    _
  %s5 = ssub.s32 1, %s3
  %s6 = scalar_select 0, %s5, %s3
  $region1: #{image_encoder_forward.1} parent=0
    #allocation2 [shape = 'u8[1024]{0}', space=vmem, size = 0x400, scoped, tag = 'output window, operand 0, single buffered']
    #allocation3 [shape = 's32[1]{0}', space=sflag, size = 0x4, scoped, tag = 'scoped memory for image_encoder_forward.1']
    %7 = vsyncpa [#allocation3], 0
    // Predicated region
    $region2: #{image_encoder_forward.1} parent=1 // pred_check
      _
    $region3: #{image_encoder_forward.1} parent=1 // pred_check_branch
      %9 = sbr.rel (0) target = $region5
    $region4: #{image_encoder_forward.1} parent=1 // pred_region
      _
    $region5: #{image_encoder_forward.1} parent=1 // pred_fallthru
      _
    // Predicated region
    $region6: #{image_encoder_forward.1} parent=1 // pred_check
      _
    $region7: #{image_encoder_forward.1} parent=1 // pred_check_branch
      %11 = sbr.rel (0) target = $region9
    $region8: #{image_encoder_forward.1} parent=1 // pred_region
      _
    $region9: #{image_encoder_forward.1} parent=1 // pred_fallthru
      _
    %v12 = vld [vmem:[%s0] sm:$0xff]
    %v13 = vld [vmem:[%s0 + $0x8] sm:$0xff]
    %v14 = vld [vmem:[%s0 + $0x10] sm:$0xff]
    %v15 = vld [vmem:[%s0 + $0x18] sm:$0xff]
    %v16 = vld [vmem:[%s1] sm:$0xff]
    %v17 = vld [vmem:[%s1 + $0x8] sm:$0xff]
    %v18 = vld [vmem:[%s1 + $0x10] sm:$0xff]
    %v19 = vld [vmem:[%s1 + $0x18] sm:$0xff]
    %v20 = vld [vmem:[%s1 + $0x20] sm:$0xff]
    %v21 = vld [vmem:[%s1 + $0x28] sm:$0xff]
    %v22 = vld [vmem:[%s1 + $0x30] sm:$0xff]
    %v23 = vld [vmem:[%s1 + $0x38] sm:$0xff]
    %v24 = vld [vmem:[%s1 + $0x40] sm:$0xff]
    %v25 = vld [vmem:[%s1 + $0x48] sm:$0xff]
    %v26 = vld [vmem:[%s1 + $0x50] sm:$0xff]
    %v27 = vld [vmem:[%s1 + $0x58] sm:$0xff]
    %v28 = vld [vmem:[%s1 + $0x60] sm:$0x1]
    %v29 = vld [vmem:[%s1 + $0x68] sm:$0xff]
    %v30 = vld [vmem:[%s1 + $0x70] sm:$0xff]
    %v31 = vld [vmem:[%s1 + $0x78] sm:$0xff]
    %v32 = vld [vmem:[%s1 + $0x80] sm:$0xff]
    %v33 = vld [vmem:[%s1 + $0x88] sm:$0xff]
    %v34 = vld [vmem:[%s1 + $0x90] sm:$0xff]
    %v35 = vld [vmem:[%s1 + $0x98] sm:$0xff]
    %v36 = vld [vmem:[%s1 + $0xa0] sm:$0xff]
    %v37 = vld [vmem:[%s1 + $0x68] sm:$0xff]
    %v38 = vld [vmem:[%s1 + $0x70] sm:$0xff]
    %v39 = vld [vmem:[%s1 + $0x78] sm:$0xff]
    %v40 = vld [vmem:[%s1 + $0x80] sm:$0xff]
    %v41 = vld [vmem:[%s1 + $0x88] sm:$0xff]
    %v42 = vld [vmem:[%s1 + $0x90] sm:$0x3]
    %v43 = vld [vmem:[%s1 + $0x90] sm:$0xff]
    %50 = vrot.lane.b32.xlu0 %v37, 32
    %v51 = vpop.permute.xlu0 %50
    %52 = vrot.lane.b32.xlu0 %v38, 32
    %v53 = vpop.permute.xlu0 %52
    %54 = vrot.lane.b32.xlu0 %v39, 32
    %v55 = vpop.permute.xlu0 %54
    %56 = vrot.lane.b32.xlu0 %v40, 32
    %v57 = vpop.permute.xlu0 %56
    %58 = vrot.lane.b32.xlu0 %v41, 32
    %v59 = vpop.permute.xlu0 %58
    %60 = vrot.lane.b32.xlu0 %v43, 32
    %v61 = vpop.permute.xlu0 %60
    %68 = vrot.lane.b32.xlu0 %v37, 96
    %v69 = vpop.permute.xlu0 %68
    %70 = vrot.lane.b32.xlu0 %v38, 96
    %v71 = vpop.permute.xlu0 %70
    %72 = vrot.lane.b32.xlu0 %v39, 96
    %v73 = vpop.permute.xlu0 %72
    %74 = vrot.lane.b32.xlu0 %v40, 96
    %v75 = vpop.permute.xlu0 %74
    %vm80 = vcmask 392192
    %v82 = vsel %vm80, %v12, 0
    %v85 = vsel %vm80, %v13, 0
    %v88 = vsel %vm80, %v14, 0
    %v91 = vsel %vm80, %v15, 0
    %93 = vmatprep.subr.mxu0 0.0
    %94 = vmatpush1.msra.mxu0 %v51
    %95 = vmatprep.subr.mxu0 0.0
    %96 = vmatpush1.msra.mxu0 %v53
    %97 = vmatprep.subr.mxu0 0.0
    %98 = vmatpush1.msra.mxu0 %v55
    %99 = vmatprep.subr.mxu0 0.0
    %100 = vmatpush1.msra.mxu0 %v57
    %101 = vmatprep.subr.mxu0 0.0
    %102 = vmatpush1.msra.mxu0 %v59
    %103 = vmatprep.subr.mxu0 0.0
    %104 = vmatpush1.msra.mxu0 %v61
    %105 = vmatprep.subr.mxu0 0.0
    %106 = vmatpush1.msra.mxu0 0.0
    %107 = vmatprep.subr.mxu0 0.0
    %108 = vmatpush1.msra.mxu0 0.0
    %109 = vmatprep.subr.mxu0 0.0
    %110 = vmatpush1.msra.mxu0 0.0
    %111 = vmatprep.subr.mxu0 0.0
    %112 = vmatpush1.msra.mxu0 0.0
    %113 = vmatprep.subr.mxu0 0.0
    %114 = vmatpush1.msra.mxu0 0.0
    %115 = vmatprep.subr.mxu0 0.0
    %116 = vmatpush1.msra.mxu0 0.0
    %117 = vmatprep.subr.mxu0 0.0
    %118 = vmatpush1.msra.mxu0 0.0
    %119 = vmatprep.subr.mxu0 0.0
    %120 = vmatpush1.msra.mxu0 0.0
    %121 = vmatprep.subr.mxu0 0.0
    %122 = vmatpush1.msra.mxu0 0.0
    %123 = vmatprep.subr.mxu0 0.0
    %124 = vmatpush1.msra.mxu0 0.0
    %125 = vmatprep.subr.mxu0 0.0
    %126 = vmatpush1.msra.mxu0 0.0
    %127 = vmatprep.subr.mxu0 0.0
    %128 = vmatpush1.msra.mxu0 0.0
    %129 = vmatprep.subr.mxu0 0.0
    %130 = vmatpush1.msra.mxu0 0.0
    %131 = vmatprep.subr.mxu0 0.0
    %132 = vmatpush1.msra.mxu0 0.0
    %133 = vmatprep.subr.mxu0 0.0
    %134 = vmatpush1.msra.mxu0 0.0
    %135 = vmatprep.subr.mxu0 0.0
    %136 = vmatpush1.msra.mxu0 0.0
    %137 = vmatprep.subr.mxu0 0.0
    %138 = vmatpush1.msra.mxu0 0.0
    %139 = vmatprep.subr.mxu0 0.0
    %140 = vmatpush1.msra.mxu0 0.0
    %141 = vmatprep.subr.mxu0 0.0
    %142 = vmatpush1.msra.mxu0 0.0
    %143 = vmatprep.subr.mxu0 0.0
    %144 = vmatpush1.msra.mxu0 0.0
    %145 = vmatprep.subr.mxu0 0.0
    %146 = vmatpush1.msra.mxu0 0.0
    %147 = vmatprep.subr.mxu0 0.0
    %148 = vmatpush1.msra.mxu0 0.0
    %149 = vmatprep.subr.mxu0 0.0
    %150 = vmatpush1.msra.mxu0 0.0
    %151 = vmatprep.subr.mxu0 0.0
    %152 = vmatpush1.msra.mxu0 0.0
    %153 = vmatprep.subr.mxu0 0.0
    %154 = vmatpush1.msra.mxu0 0.0
    %155 = vmatprep.subr.mxu0 0.0
    %156 = vmatpush1.msra.mxu0 0.0
    %157 = vmatprep.mubr.f32.mxu0 0.0
    %158 = vmatmul.mubr.f32.gmra.mrb[0].mxu0 %v82
    %v159 = vpop.f32.mrb[0].mxu0
    %v160 = vadd.f32 %v69, %v159
    %v161 = vpop.f32.mrb[0].mxu0
    %162 = vmatprep.mubr.f32.mxu0 0.0
    %163 = vmatmul.mubr.f32.gmra.mrb[0].mxu0 %v85
    %v164 = vpop.f32.mrb[0].mxu0
    %v165 = vadd.f32 %v71, %v164
    %v166 = vpop.f32.mrb[0].mxu0
    %167 = vmatprep.mubr.f32.mxu0 0.0
    %168 = vmatmul.mubr.f32.gmra.mrb[0].mxu0 %v88
    %v169 = vpop.f32.mrb[0].mxu0
    %v170 = vadd.f32 %v73, %v169
    %v171 = vpop.f32.mrb[0].mxu0
    %172 = vmatprep.mubr.f32.mxu0 0.0
    %173 = vmatmul.mubr.f32.gmra.mrb[0].mxu0 %v91
    %v174 = vpop.f32.mrb[0].mxu0
    %v175 = vadd.f32 %v75, %v174
    %v176 = vpop.f32.mrb[0].mxu0
    %177 = vdwg.mxu0
    %vm178 = vcmask 261120
    %v179 = vsel %vm178, %v160, 0.0
    %180 = vadd.xlane.f32.xlu0 %v179
    %v181 = vpop.xlane.xlu0 %180
    %v182 = vsel %vm178, %v165, 0.0
    %183 = vadd.xlane.f32.xlu0 %v182
    %v184 = vpop.xlane.xlu0 %183
    %v185 = vsel %vm178, %v170, 0.0
    %186 = vadd.xlane.f32.xlu0 %v185
    %v187 = vpop.xlane.xlu0 %186
    %v188 = vsel %vm178, %v175, 0.0
    %189 = vadd.xlane.f32.xlu0 %v188
    %v190 = vpop.xlane.xlu0 %189
    %v191 = vrcp.pop 32.0
    %v192 = vmul.f32 %v181, %v191
    %v193 = vmul.f32 %v184, %v191
    %v194 = vmul.f32 %v187, %v191
    %v195 = vmul.f32 %v190, %v191
    %v196 = vmul.f32 %v160, %v160
    %v197 = vmul.f32 %v165, %v165
    %v198 = vmul.f32 %v170, %v170
    %v199 = vmul.f32 %v175, %v175
    %v200 = vsel %vm178, %v196, 0.0
    %201 = vadd.xlane.f32.xlu0 %v200
    %v202 = vpop.xlane.xlu0 %201
    %v203 = vsel %vm178, %v197, 0.0
    %204 = vadd.xlane.f32.xlu0 %v203
    %v205 = vpop.xlane.xlu0 %204
    %v206 = vsel %vm178, %v198, 0.0
    %207 = vadd.xlane.f32.xlu0 %v206
    %v208 = vpop.xlane.xlu0 %207
    %v209 = vsel %vm178, %v199, 0.0
    %210 = vadd.xlane.f32.xlu0 %v209
    %v211 = vpop.xlane.xlu0 %210
    %v212 = vmul.f32 %v202, %v191
    %v213 = vmul.f32 %v205, %v191
    %v214 = vmul.f32 %v208, %v191
    %v215 = vmul.f32 %v211, %v191
    %v216 = vmul.f32 %v192, %v192
    %v217 = vmul.f32 %v193, %v193
    %v218 = vmul.f32 %v194, %v194
    %v219 = vmul.f32 %v195, %v195
    %v220 = vsub.f32 %v212, %v216
    %v221 = vsub.f32 %v213, %v217
    %v222 = vsub.f32 %v214, %v218
    %v223 = vsub.f32 %v215, %v219
    %v224 = vsub.f32 %v160, %v192
    %v225 = vsub.f32 %v165, %v193
    %v226 = vsub.f32 %v170, %v194
    %v227 = vsub.f32 %v175, %v195
    %v228 = vadd.f32 %v220, 1e-05
    %v229 = vadd.f32 %v221, 1e-05
    %v230 = vadd.f32 %v222, 1e-05
    %v231 = vadd.f32 %v223, 1e-05
    %v232 = vrsqrt.pop %v228
    %v233 = vrsqrt.pop %v229
    %v234 = vrsqrt.pop %v230
    %v235 = vrsqrt.pop %v231
    %v236 = vmul.f32 %v224, %v232
    %v237 = vmul.f32 %v225, %v233
    %v238 = vmul.f32 %v226, %v234
    %v239 = vmul.f32 %v227, %v235
    %v240 = vlaneseq
    %v241 = vshrl.u32 %v240, 7
    %v242 = vsub.s32 0, %v241
    %v243 = vrot.slane %v41, %v242
    %245 = vrot.lane.b32.xlu0 %v243, 64
    %v246 = vpop.permute.xlu0 %245
    %v248 = vmul.f32 %v236, %v246
    %v249 = vmul.f32 %v237, %v246
    %v250 = vmul.f32 %v238, %v246
    %v251 = vmul.f32 %v239, %v246
    %v252 = vlaneseq
    %v253 = vshrl.u32 %v252, 7
    %v254 = vsub.s32 1, %v253
    %v255 = vrot.slane %v41, %v254
    %257 = vrot.lane.b32.xlu0 %v255, 64
    %v258 = vpop.permute.xlu0 %257
    %v260 = vadd.f32 %v248, %v258
    %v261 = vadd.f32 %v249, %v258
    %v262 = vadd.f32 %v250, %v258
    %v263 = vadd.f32 %v251, %v258
    %v265 = vsel %vm178, %v260, 0
    %v268 = vsel %vm178, %v261, 0
    %v271 = vsel %vm178, %v262, 0
    %v274 = vsel %vm178, %v263, 0
    %276 = vmatprep.subr.mxu0 0.0
    %277 = vmatpush1.msra.mxu0 %v16
    %278 = vmatprep.subr.mxu0 0.0
    %279 = vmatpush1.msra.mxu0 %v17
    %280 = vmatprep.subr.mxu0 0.0
    %281 = vmatpush1.msra.mxu0 %v18
    %282 = vmatprep.subr.mxu0 0.0
    %283 = vmatpush1.msra.mxu0 %v19
    %284 = vmatprep.subr.mxu0 0.0
    %285 = vmatpush1.msra.mxu0 0.0
    %286 = vmatprep.subr.mxu0 0.0
    %287 = vmatpush1.msra.mxu0 0.0
    %288 = vmatprep.subr.mxu0 0.0
    %289 = vmatpush1.msra.mxu0 0.0
    %290 = vmatprep.subr.mxu0 0.0
    %291 = vmatpush1.msra.mxu0 0.0
    %292 = vmatprep.subr.mxu0 0.0
    %293 = vmatpush1.msra.mxu0 0.0
    %294 = vmatprep.subr.mxu0 0.0
    %295 = vmatpush1.msra.mxu0 0.0
    %296 = vmatprep.subr.mxu0 0.0
    %297 = vmatpush1.msra.mxu0 0.0
    %298 = vmatprep.subr.mxu0 0.0
    %299 = vmatpush1.msra.mxu0 0.0
    %300 = vmatprep.subr.mxu0 0.0
    %301 = vmatpush1.msra.mxu0 0.0
    %302 = vmatprep.subr.mxu0 0.0
    %303 = vmatpush1.msra.mxu0 0.0
    %304 = vmatprep.subr.mxu0 0.0
    %305 = vmatpush1.msra.mxu0 0.0
    %306 = vmatprep.subr.mxu0 0.0
    %307 = vmatpush1.msra.mxu0 0.0
    %308 = vmatprep.subr.mxu0 0.0
    %309 = vmatpush1.msra.mxu0 0.0
    %310 = vmatprep.subr.mxu0 0.0
    %311 = vmatpush1.msra.mxu0 0.0
    %312 = vmatprep.subr.mxu0 0.0
    %313 = vmatpush1.msra.mxu0 0.0
    %314 = vmatprep.subr.mxu0 0.0
    %315 = vmatpush1.msra.mxu0 0.0
    %316 = vmatprep.subr.mxu0 0.0
    %317 = vmatpush1.msra.mxu0 0.0
    %318 = vmatprep.subr.mxu0 0.0
    %319 = vmatpush1.msra.mxu0 0.0
    %320 = vmatprep.subr.mxu0 0.0
    %321 = vmatpush1.msra.mxu0 0.0
    %322 = vmatprep.subr.mxu0 0.0
    %323 = vmatpush1.msra.mxu0 0.0
    %324 = vmatprep.subr.mxu0 0.0
    %325 = vmatpush1.msra.mxu0 0.0
    %326 = vmatprep.subr.mxu0 0.0
    %327 = vmatpush1.msra.mxu0 0.0
    %328 = vmatprep.subr.mxu0 0.0
    %329 = vmatpush1.msra.mxu0 0.0
    %330 = vmatprep.subr.mxu0 0.0
    %331 = vmatpush1.msra.mxu0 0.0
    %332 = vmatprep.subr.mxu0 0.0
    %333 = vmatpush1.msra.mxu0 0.0
    %334 = vmatprep.subr.mxu0 0.0
    %335 = vmatpush1.msra.mxu0 0.0
    %336 = vmatprep.subr.mxu0 0.0
    %337 = vmatpush1.msra.mxu0 0.0
    %338 = vmatprep.subr.mxu0 0.0
    %339 = vmatpush1.msra.mxu0 0.0
    %340 = vmatprep.mubr.f32.mxu0 0.0
    %341 = vmatmul.mubr.f32.gmra.mrb[0].mxu0 %v265
    %v342 = vpop.f32.mrb[0].mxu0
    %v343 = vadd.f32 0.0, %v342
    %v344 = vpop.f32.mrb[0].mxu0
    %345 = vmatprep.mubr.f32.mxu0 0.0
    %346 = vmatmul.mubr.f32.gmra.mrb[0].mxu0 %v268
    %v347 = vpop.f32.mrb[0].mxu0
    %v348 = vadd.f32 0.0, %v347
    %v349 = vpop.f32.mrb[0].mxu0
    %350 = vmatprep.mubr.f32.mxu0 0.0
    %351 = vmatmul.mubr.f32.gmra.mrb[0].mxu0 %v271
    %v352 = vpop.f32.mrb[0].mxu0
    %v353 = vadd.f32 0.0, %v352
    %v354 = vpop.f32.mrb[0].mxu0
    %355 = vmatprep.mubr.f32.mxu0 0.0
    %356 = vmatmul.mubr.f32.gmra.mrb[0].mxu0 %v274
    %v357 = vpop.f32.mrb[0].mxu0
    %v358 = vadd.f32 0.0, %v357
    %v359 = vpop.f32.mrb[0].mxu0
    %360 = vdwg.mxu0
    %365 = vrot.lane.b32.xlu0 %v343, 96
    %v366 = vpop.permute.xlu0 %365
    %367 = vrot.lane.b32.xlu0 %v348, 96
    %v368 = vpop.permute.xlu0 %367
    %369 = vrot.lane.b32.xlu0 %v353, 96
    %v370 = vpop.permute.xlu0 %369
    %371 = vrot.lane.b32.xlu0 %v358, 96
    %v372 = vpop.permute.xlu0 %371
    %373 = vrot.lane.b32.xlu0 %v343, 64
    %v374 = vpop.permute.xlu0 %373
    %375 = vrot.lane.b32.xlu0 %v348, 64
    %v376 = vpop.permute.xlu0 %375
    %377 = vrot.lane.b32.xlu0 %v353, 64
    %v378 = vpop.permute.xlu0 %377
    %379 = vrot.lane.b32.xlu0 %v358, 64
    %v380 = vpop.permute.xlu0 %379
    %v381 = vsel %vm178, %v343, 0
    %v383 = vsel %vm178, %v348, 0
    %v385 = vsel %vm178, %v353, 0
    %v387 = vsel %vm178, %v358, 0
    %v389 = vsel %vm178, %v366, 0
    %v391 = vsel %vm178, %v368, 0
    %v393 = vsel %vm178, %v370, 0
    %v395 = vsel %vm178, %v372, 0
    %v397 = vsel %vm178, %v374, 0
    %v399 = vsel %vm178, %v376, 0
    %v401 = vsel %vm178, %v378, 0
    %v403 = vsel %vm178, %v380, 0
    %405 = vmatprep.subr.mxu0 0.0
    %406 = vmatpush1.xpose.msra.mxu0 %v397
    %407 = vmatprep.subr.mxu0 0.0
    %408 = vmatpush1.xpose.msra.mxu0 %v399
    %409 = vmatprep.subr.mxu0 0.0
    %410 = vmatpush1.xpose.msra.mxu0 %v401
    %411 = vmatprep.subr.mxu0 0.0
    %412 = vmatpush1.xpose.msra.mxu0 %v403
    %413 = vmatprep.subr.mxu0 0.0
    %414 = vmatpush1.xpose.msra.mxu0 0.0
    %415 = vmatprep.subr.mxu0 0.0
    %416 = vmatpush1.xpose.msra.mxu0 0.0
    %417 = vmatprep.subr.mxu0 0.0
    %418 = vmatpush1.xpose.msra.mxu0 0.0
    %419 = vmatprep.subr.mxu0 0.0
    %420 = vmatpush1.xpose.msra.mxu0 0.0
    %421 = vmatprep.subr.mxu0 0.0
    %422 = vmatpush1.xpose.msra.mxu0 0.0
    %423 = vmatprep.subr.mxu0 0.0
    %424 = vmatpush1.xpose.msra.mxu0 0.0
    %425 = vmatprep.subr.mxu0 0.0
    %426 = vmatpush1.xpose.msra.mxu0 0.0
    %427 = vmatprep.subr.mxu0 0.0
    %428 = vmatpush1.xpose.msra.mxu0 0.0
    %429 = vmatprep.subr.mxu0 0.0
    %430 = vmatpush1.xpose.msra.mxu0 0.0
    %431 = vmatprep.subr.mxu0 0.0
    %432 = vmatpush1.xpose.msra.mxu0 0.0
    %433 = vmatprep.subr.mxu0 0.0
    %434 = vmatpush1.xpose.msra.mxu0 0.0
    %435 = vmatprep.subr.mxu0 0.0
    %436 = vmatpush1.xpose.msra.mxu0 0.0
    %437 = vmatprep.subr.mxu0 0.0
    %438 = vmatpush1.xpose.msra.mxu0 0.0
    %439 = vmatprep.subr.mxu0 0.0
    %440 = vmatpush1.xpose.msra.mxu0 0.0
    %441 = vmatprep.subr.mxu0 0.0
    %442 = vmatpush1.xpose.msra.mxu0 0.0
    %443 = vmatprep.subr.mxu0 0.0
    %444 = vmatpush1.xpose.msra.mxu0 0.0
    %445 = vmatprep.subr.mxu0 0.0
    %446 = vmatpush1.xpose.msra.mxu0 0.0
    %447 = vmatprep.subr.mxu0 0.0
    %448 = vmatpush1.xpose.msra.mxu0 0.0
    %449 = vmatprep.subr.mxu0 0.0
    %450 = vmatpush1.xpose.msra.mxu0 0.0
    %451 = vmatprep.subr.mxu0 0.0
    %452 = vmatpush1.xpose.msra.mxu0 0.0
    %453 = vmatprep.subr.mxu0 0.0
    %454 = vmatpush1.xpose.msra.mxu0 0.0
    %455 = vmatprep.subr.mxu0 0.0
    %456 = vmatpush1.xpose.msra.mxu0 0.0
    %457 = vmatprep.subr.mxu0 0.0
    %458 = vmatpush1.xpose.msra.mxu0 0.0
    %459 = vmatprep.subr.mxu0 0.0
    %460 = vmatpush1.xpose.msra.mxu0 0.0
    %461 = vmatprep.subr.mxu0 0.0
    %462 = vmatpush1.xpose.msra.mxu0 0.0
    %463 = vmatprep.subr.mxu0 0.0
    %464 = vmatpush1.xpose.msra.mxu0 0.0
    %465 = vmatprep.subr.mxu0 0.0
    %466 = vmatpush1.xpose.msra.mxu0 0.0
    %467 = vmatprep.subr.mxu0 0.0
    %468 = vmatpush1.xpose.msra.mxu0 0.0
    %469 = vmatprep.mubr.f32.mxu0 0.0
    %470 = vmatmul.mubr.f32.gmra.mrb[0].mxu0 %v381
    %v471 = vpop.f32.mrb[0].mxu0
    %v472 = vadd.f32 %v29, %v471
    %v473 = vpop.f32.mrb[0].mxu0
    %474 = vmatprep.mubr.f32.mxu0 0.0
    %475 = vmatmul.mubr.f32.gmra.mrb[0].mxu0 %v383
    %v476 = vpop.f32.mrb[0].mxu0
    %v477 = vadd.f32 %v30, %v476
    %v478 = vpop.f32.mrb[0].mxu0
    %479 = vmatprep.mubr.f32.mxu0 0.0
    %480 = vmatmul.mubr.f32.gmra.mrb[0].mxu0 %v385
    %v481 = vpop.f32.mrb[0].mxu0
    %v482 = vadd.f32 %v31, %v481
    %v483 = vpop.f32.mrb[0].mxu0
    %484 = vmatprep.mubr.f32.mxu0 0.0
    %485 = vmatmul.mubr.f32.gmra.mrb[0].mxu0 %v387
    %v486 = vpop.f32.mrb[0].mxu0
    %v487 = vadd.f32 %v32, %v486
    %v488 = vpop.f32.mrb[0].mxu0
    %489 = vmatprep.mubr.f32.mxu0 0.0
    %490 = vmatmul.mubr.f32.gmra.mrb[0].mxu0 %v389
    %v491 = vpop.f32.mrb[0].mxu0
    %v492 = vadd.f32 %v33, %v491
    %v493 = vpop.f32.mrb[0].mxu0
    %494 = vmatprep.mubr.f32.mxu0 0.0
    %495 = vmatmul.mubr.f32.gmra.mrb[0].mxu0 %v391
    %v496 = vpop.f32.mrb[0].mxu0
    %v497 = vadd.f32 %v34, %v496
    %v498 = vpop.f32.mrb[0].mxu0
    %499 = vmatprep.mubr.f32.mxu0 0.0
    %500 = vmatmul.mubr.f32.gmra.mrb[0].mxu0 %v393
    %v501 = vpop.f32.mrb[0].mxu0
    %v502 = vadd.f32 %v35, %v501
    %v503 = vpop.f32.mrb[0].mxu0
    %504 = vmatprep.mubr.f32.mxu0 0.0
    %505 = vmatmul.mubr.f32.gmra.mrb[0].mxu0 %v395
    %v506 = vpop.f32.mrb[0].mxu0
    %v507 = vadd.f32 %v36, %v506
    %v508 = vpop.f32.mrb[0].mxu0
    %509 = vdwg.mxu0
    %v510 = vsel %vm178, %v472, -inf
    %511 = vmax.xlane.f32.xlu0 %v510
    %v512 = vpop.xlane.xlu0 %511
    %v513 = vsel %vm178, %v477, -inf
    %514 = vmax.xlane.f32.xlu0 %v513
    %v515 = vpop.xlane.xlu0 %514
    %v516 = vsel %vm178, %v482, -inf
    %517 = vmax.xlane.f32.xlu0 %v516
    %v518 = vpop.xlane.xlu0 %517
    %v519 = vsel %vm178, %v487, -inf
    %520 = vmax.xlane.f32.xlu0 %v519
    %v521 = vpop.xlane.xlu0 %520
    %v522 = vsel %vm178, %v492, -inf
    %523 = vmax.xlane.f32.xlu0 %v522
    %v524 = vpop.xlane.xlu0 %523
    %v525 = vsel %vm178, %v497, -inf
    %526 = vmax.xlane.f32.xlu0 %v525
    %v527 = vpop.xlane.xlu0 %526
    %v528 = vsel %vm178, %v502, -inf
    %529 = vmax.xlane.f32.xlu0 %v528
    %v530 = vpop.xlane.xlu0 %529
    %v531 = vsel %vm178, %v507, -inf
    %532 = vmax.xlane.f32.xlu0 %v531
    %v533 = vpop.xlane.xlu0 %532
    %v534 = vsub.f32 %v472, %v512
    %v535 = vsub.f32 %v477, %v515
    %v536 = vsub.f32 %v482, %v518
    %v537 = vsub.f32 %v487, %v521
    %v538 = vsub.f32 %v492, %v524
    %v539 = vsub.f32 %v497, %v527
    %v540 = vsub.f32 %v502, %v530
    %v541 = vsub.f32 %v507, %v533
    %v542 = vmul.f32 %v534, 1.442695
    %v543 = vpow.pop %v542
    %v544 = vmul.f32 %v535, 1.442695
    %v545 = vpow.pop %v544
    %v546 = vmul.f32 %v536, 1.442695
    %v547 = vpow.pop %v546
    %v548 = vmul.f32 %v537, 1.442695
    %v549 = vpow.pop %v548
    %v550 = vmul.f32 %v538, 1.442695
    %v551 = vpow.pop %v550
    %v552 = vmul.f32 %v539, 1.442695
    %v553 = vpow.pop %v552
    %v554 = vmul.f32 %v540, 1.442695
    %v555 = vpow.pop %v554
    %v556 = vmul.f32 %v541, 1.442695
    %v557 = vpow.pop %v556
    %v558 = vsel %vm178, %v543, 0.0
    %559 = vadd.xlane.f32.xlu0 %v558
    %v560 = vpop.xlane.xlu0 %559
    %v561 = vsel %vm178, %v545, 0.0
    %562 = vadd.xlane.f32.xlu0 %v561
    %v563 = vpop.xlane.xlu0 %562
    %v564 = vsel %vm178, %v547, 0.0
    %565 = vadd.xlane.f32.xlu0 %v564
    %v566 = vpop.xlane.xlu0 %565
    %v567 = vsel %vm178, %v549, 0.0
    %568 = vadd.xlane.f32.xlu0 %v567
    %v569 = vpop.xlane.xlu0 %568
    %v570 = vsel %vm178, %v551, 0.0
    %571 = vadd.xlane.f32.xlu0 %v570
    %v572 = vpop.xlane.xlu0 %571
    %v573 = vsel %vm178, %v553, 0.0
    %574 = vadd.xlane.f32.xlu0 %v573
    %v575 = vpop.xlane.xlu0 %574
    %v576 = vsel %vm178, %v555, 0.0
    %577 = vadd.xlane.f32.xlu0 %v576
    %v578 = vpop.xlane.xlu0 %577
    %v579 = vsel %vm178, %v557, 0.0
    %580 = vadd.xlane.f32.xlu0 %v579
    %v581 = vpop.xlane.xlu0 %580
    %v582 = vrcp.pop %v560
    %v583 = vrcp.pop %v563
    %v584 = vrcp.pop %v566
    %v585 = vrcp.pop %v569
    %v586 = vrcp.pop %v572
    %v587 = vrcp.pop %v575
    %v588 = vrcp.pop %v578
    %v589 = vrcp.pop %v581
    %v590 = vmul.f32 %v543, %v582
    %v591 = vmul.f32 %v545, %v583
    %v592 = vmul.f32 %v547, %v584
    %v593 = vmul.f32 %v549, %v585
    %v594 = vmul.f32 %v551, %v586
    %v595 = vmul.f32 %v553, %v587
    %v596 = vmul.f32 %v555, %v588
    %v597 = vmul.f32 %v557, %v589
    %598 = vrot.lane.b32.xlu0 %v343, 32
    %v599 = vpop.permute.xlu0 %598
    %600 = vrot.lane.b32.xlu0 %v348, 32
    %v601 = vpop.permute.xlu0 %600
    %602 = vrot.lane.b32.xlu0 %v353, 32
    %v603 = vpop.permute.xlu0 %602
    %604 = vrot.lane.b32.xlu0 %v358, 32
    %v605 = vpop.permute.xlu0 %604
    %v611 = vsel %vm178, %v590, 0
    %v614 = vsel %vm178, %v591, 0
    %v617 = vsel %vm178, %v592, 0
    %v620 = vsel %vm178, %v593, 0
    %v623 = vsel %vm178, %v594, 0
    %v626 = vsel %vm178, %v595, 0
    %v629 = vsel %vm178, %v596, 0
    %v632 = vsel %vm178, %v597, 0
    %634 = vmatprep.subr.mxu0 0.0
    %635 = vmatpush1.msra.mxu0 %v599
    %636 = vmatprep.subr.mxu0 0.0
    %637 = vmatpush1.msra.mxu0 %v601
    %638 = vmatprep.subr.mxu0 0.0
    %639 = vmatpush1.msra.mxu0 %v603
    %640 = vmatprep.subr.mxu0 0.0
    %641 = vmatpush1.msra.mxu0 %v605
    %642 = vmatprep.subr.mxu0 0.0
    %643 = vmatpush1.msra.mxu0 0.0
    %644 = vmatprep.subr.mxu0 0.0
    %645 = vmatpush1.msra.mxu0 0.0
    %646 = vmatprep.subr.mxu0 0.0
    %647 = vmatpush1.msra.mxu0 0.0
    %648 = vmatprep.subr.mxu0 0.0
    %649 = vmatpush1.msra.mxu0 0.0
    %650 = vmatprep.subr.mxu0 0.0
    %651 = vmatpush1.msra.mxu0 0.0
    %652 = vmatprep.subr.mxu0 0.0
    %653 = vmatpush1.msra.mxu0 0.0
    %654 = vmatprep.subr.mxu0 0.0
    %655 = vmatpush1.msra.mxu0 0.0
    %656 = vmatprep.subr.mxu0 0.0
    %657 = vmatpush1.msra.mxu0 0.0
    %658 = vmatprep.subr.mxu0 0.0
    %659 = vmatpush1.msra.mxu0 0.0
    %660 = vmatprep.subr.mxu0 0.0
    %661 = vmatpush1.msra.mxu0 0.0
    %662 = vmatprep.subr.mxu0 0.0
    %663 = vmatpush1.msra.mxu0 0.0
    %664 = vmatprep.subr.mxu0 0.0
    %665 = vmatpush1.msra.mxu0 0.0
    %666 = vmatprep.subr.mxu0 0.0
    %667 = vmatpush1.msra.mxu0 0.0
    %668 = vmatprep.subr.mxu0 0.0
    %669 = vmatpush1.msra.mxu0 0.0
    %670 = vmatprep.subr.mxu0 0.0
    %671 = vmatpush1.msra.mxu0 0.0
    %672 = vmatprep.subr.mxu0 0.0
    %673 = vmatpush1.msra.mxu0 0.0
    %674 = vmatprep.subr.mxu0 0.0
    %675 = vmatpush1.msra.mxu0 0.0
    %676 = vmatprep.subr.mxu0 0.0
    %677 = vmatpush1.msra.mxu0 0.0
    %678 = vmatprep.subr.mxu0 0.0
    %679 = vmatpush1.msra.mxu0 0.0
    %680 = vmatprep.subr.mxu0 0.0
    %681 = vmatpush1.msra.mxu0 0.0
    %682 = vmatprep.subr.mxu0 0.0
    %683 = vmatpush1.msra.mxu0 0.0
    %684 = vmatprep.subr.mxu0 0.0
    %685 = vmatpush1.msra.mxu0 0.0
    %686 = vmatprep.subr.mxu0 0.0
    %687 = vmatpush1.msra.mxu0 0.0
    %688 = vmatprep.subr.mxu0 0.0
    %689 = vmatpush1.msra.mxu0 0.0
    %690 = vmatprep.subr.mxu0 0.0
    %691 = vmatpush1.msra.mxu0 0.0
    %692 = vmatprep.subr.mxu0 0.0
    %693 = vmatpush1.msra.mxu0 0.0
    %694 = vmatprep.subr.mxu0 0.0
    %695 = vmatpush1.msra.mxu0 0.0
    %696 = vmatprep.subr.mxu0 0.0
    %697 = vmatpush1.msra.mxu0 0.0
    %698 = vmatprep.mubr.f32.mxu0 0.0
    %699 = vmatmul.mubr.f32.gmra.mrb[0].mxu0 %v611
    %v700 = vpop.f32.mrb[0].mxu0
    %v701 = vadd.f32 0.0, %v700
    %v702 = vpop.f32.mrb[0].mxu0
    %703 = vmatprep.mubr.f32.mxu0 0.0
    %704 = vmatmul.mubr.f32.gmra.mrb[0].mxu0 %v614
    %v705 = vpop.f32.mrb[0].mxu0
    %v706 = vadd.f32 0.0, %v705
    %v707 = vpop.f32.mrb[0].mxu0
    %708 = vmatprep.mubr.f32.mxu0 0.0
    %709 = vmatmul.mubr.f32.gmra.mrb[0].mxu0 %v617
    %v710 = vpop.f32.mrb[0].mxu0
    %v711 = vadd.f32 0.0, %v710
    %v712 = vpop.f32.mrb[0].mxu0
    %713 = vmatprep.mubr.f32.mxu0 0.0
    %714 = vmatmul.mubr.f32.gmra.mrb[0].mxu0 %v620
    %v715 = vpop.f32.mrb[0].mxu0
    %v716 = vadd.f32 0.0, %v715
    %v717 = vpop.f32.mrb[0].mxu0
    %718 = vmatprep.mubr.f32.mxu0 0.0
    %719 = vmatmul.mubr.f32.gmra.mrb[0].mxu0 %v623
    %v720 = vpop.f32.mrb[0].mxu0
    %v721 = vadd.f32 0.0, %v720
    %v722 = vpop.f32.mrb[0].mxu0
    %723 = vmatprep.mubr.f32.mxu0 0.0
    %724 = vmatmul.mubr.f32.gmra.mrb[0].mxu0 %v626
    %v725 = vpop.f32.mrb[0].mxu0
    %v726 = vadd.f32 0.0, %v725
    %v727 = vpop.f32.mrb[0].mxu0
    %728 = vmatprep.mubr.f32.mxu0 0.0
    %729 = vmatmul.mubr.f32.gmra.mrb[0].mxu0 %v629
    %v730 = vpop.f32.mrb[0].mxu0
    %v731 = vadd.f32 0.0, %v730
    %v732 = vpop.f32.mrb[0].mxu0
    %733 = vmatprep.mubr.f32.mxu0 0.0
    %734 = vmatmul.mubr.f32.gmra.mrb[0].mxu0 %v632
    %v735 = vpop.f32.mrb[0].mxu0
    %v736 = vadd.f32 0.0, %v735
    %v737 = vpop.f32.mrb[0].mxu0
    %738 = vdwg.mxu0
    %739 = vrot.lane.b32.xlu0 %v37, 64
    %v740 = vpop.permute.xlu0 %739
    %741 = vrot.lane.b32.xlu0 %v38, 64
    %v742 = vpop.permute.xlu0 %741
    %743 = vrot.lane.b32.xlu0 %v39, 64
    %v744 = vpop.permute.xlu0 %743
    %745 = vrot.lane.b32.xlu0 %v40, 64
    %v746 = vpop.permute.xlu0 %745
    %v752 = vsel %vm178, %v721, 0
    %v755 = vsel %vm178, %v726, 0
    %v758 = vsel %vm178, %v731, 0
    %v761 = vsel %vm178, %v736, 0
    %763 = vmatprep.subr.mxu0 0.0
    %764 = vmatpush1.msra.mxu0 %v740
    %765 = vmatprep.subr.mxu0 0.0
    %766 = vmatpush1.msra.mxu0 %v742
    %767 = vmatprep.subr.mxu0 0.0
    %768 = vmatpush1.msra.mxu0 %v744
    %769 = vmatprep.subr.mxu0 0.0
    %770 = vmatpush1.msra.mxu0 %v746
    %771 = vmatprep.subr.mxu0 0.0
    %772 = vmatpush1.msra.mxu0 0.0
    %773 = vmatprep.subr.mxu0 0.0
    %774 = vmatpush1.msra.mxu0 0.0
    %775 = vmatprep.subr.mxu0 0.0
    %776 = vmatpush1.msra.mxu0 0.0
    %777 = vmatprep.subr.mxu0 0.0
    %778 = vmatpush1.msra.mxu0 0.0
    %779 = vmatprep.subr.mxu0 0.0
    %780 = vmatpush1.msra.mxu0 0.0
    %781 = vmatprep.subr.mxu0 0.0
    %782 = vmatpush1.msra.mxu0 0.0
    %783 = vmatprep.subr.mxu0 0.0
    %784 = vmatpush1.msra.mxu0 0.0
    %785 = vmatprep.subr.mxu0 0.0
    %786 = vmatpush1.msra.mxu0 0.0
    %787 = vmatprep.subr.mxu0 0.0
    %788 = vmatpush1.msra.mxu0 0.0
    %789 = vmatprep.subr.mxu0 0.0
    %790 = vmatpush1.msra.mxu0 0.0
    %791 = vmatprep.subr.mxu0 0.0
    %792 = vmatpush1.msra.mxu0 0.0
    %793 = vmatprep.subr.mxu0 0.0
    %794 = vmatpush1.msra.mxu0 0.0
    %795 = vmatprep.subr.mxu0 0.0
    %796 = vmatpush1.msra.mxu0 0.0
    %797 = vmatprep.subr.mxu0 0.0
    %798 = vmatpush1.msra.mxu0 0.0
    %799 = vmatprep.subr.mxu0 0.0
    %800 = vmatpush1.msra.mxu0 0.0
    %801 = vmatprep.subr.mxu0 0.0
    %802 = vmatpush1.msra.mxu0 0.0
    %803 = vmatprep.subr.mxu0 0.0
    %804 = vmatpush1.msra.mxu0 0.0
    %805 = vmatprep.subr.mxu0 0.0
    %806 = vmatpush1.msra.mxu0 0.0
    %807 = vmatprep.subr.mxu0 0.0
    %808 = vmatpush1.msra.mxu0 0.0
    %809 = vmatprep.subr.mxu0 0.0
    %810 = vmatpush1.msra.mxu0 0.0
    %811 = vmatprep.subr.mxu0 0.0
    %812 = vmatpush1.msra.mxu0 0.0
    %813 = vmatprep.subr.mxu0 0.0
    %814 = vmatpush1.msra.mxu0 0.0
    %815 = vmatprep.subr.mxu0 0.0
    %816 = vmatpush1.msra.mxu0 0.0
    %817 = vmatprep.subr.mxu0 0.0
    %818 = vmatpush1.msra.mxu0 0.0
    %819 = vmatprep.subr.mxu0 0.0
    %820 = vmatpush1.msra.mxu0 0.0
    %821 = vmatprep.subr.mxu0 0.0
    %822 = vmatpush1.msra.mxu0 0.0
    %823 = vmatprep.subr.mxu0 0.0
    %824 = vmatpush1.msra.mxu0 0.0
    %825 = vmatprep.subr.mxu0 0.0
    %826 = vmatpush1.msra.mxu0 0.0
    %827 = vmatprep.mubr.f32.mxu0 0.0
    %828 = vmatmul.mubr.f32.gmra.mrb[0].mxu0 %v752
    %v829 = vpop.f32.mrb[0].mxu0
    %v830 = vadd.f32 0.0, %v829
    %v831 = vpop.f32.mrb[0].mxu0
    %832 = vmatprep.mubr.f32.mxu0 0.0
    %833 = vmatmul.mubr.f32.gmra.mrb[0].mxu0 %v755
    %v834 = vpop.f32.mrb[0].mxu0
    %v835 = vadd.f32 0.0, %v834
    %v836 = vpop.f32.mrb[0].mxu0
    %837 = vmatprep.mubr.f32.mxu0 0.0
    %838 = vmatmul.mubr.f32.gmra.mrb[0].mxu0 %v758
    %v839 = vpop.f32.mrb[0].mxu0
    %v840 = vadd.f32 0.0, %v839
    %v841 = vpop.f32.mrb[0].mxu0
    %842 = vmatprep.mubr.f32.mxu0 0.0
    %843 = vmatmul.mubr.f32.gmra.mrb[0].mxu0 %v761
    %v844 = vpop.f32.mrb[0].mxu0
    %v845 = vadd.f32 0.0, %v844
    %v846 = vpop.f32.mrb[0].mxu0
    %847 = vdwg.mxu0
    %852 = vrot.lane.b32.xlu0 %v33, 96
    %v853 = vpop.permute.xlu0 %852
    %854 = vrot.lane.b32.xlu0 %v34, 96
    %v855 = vpop.permute.xlu0 %854
    %856 = vrot.lane.b32.xlu0 %v35, 96
    %v857 = vpop.permute.xlu0 %856
    %858 = vrot.lane.b32.xlu0 %v36, 96
    %v859 = vpop.permute.xlu0 %858
    %v865 = vsel %vm178, %v701, 0
    %v868 = vsel %vm178, %v706, 0
    %v871 = vsel %vm178, %v711, 0
    %v874 = vsel %vm178, %v716, 0
    %876 = vmatprep.subr.mxu0 0.0
    %877 = vmatpush1.msra.mxu0 %v853
    %878 = vmatprep.subr.mxu0 0.0
    %879 = vmatpush1.msra.mxu0 %v855
    %880 = vmatprep.subr.mxu0 0.0
    %881 = vmatpush1.msra.mxu0 %v857
    %882 = vmatprep.subr.mxu0 0.0
    %883 = vmatpush1.msra.mxu0 %v859
    %884 = vmatprep.subr.mxu0 0.0
    %885 = vmatpush1.msra.mxu0 0.0
    %886 = vmatprep.subr.mxu0 0.0
    %887 = vmatpush1.msra.mxu0 0.0
    %888 = vmatprep.subr.mxu0 0.0
    %889 = vmatpush1.msra.mxu0 0.0
    %890 = vmatprep.subr.mxu0 0.0
    %891 = vmatpush1.msra.mxu0 0.0
    %892 = vmatprep.subr.mxu0 0.0
    %893 = vmatpush1.msra.mxu0 0.0
    %894 = vmatprep.subr.mxu0 0.0
    %895 = vmatpush1.msra.mxu0 0.0
    %896 = vmatprep.subr.mxu0 0.0
    %897 = vmatpush1.msra.mxu0 0.0
    %898 = vmatprep.subr.mxu0 0.0
    %899 = vmatpush1.msra.mxu0 0.0
    %900 = vmatprep.subr.mxu0 0.0
    %901 = vmatpush1.msra.mxu0 0.0
    %902 = vmatprep.subr.mxu0 0.0
    %903 = vmatpush1.msra.mxu0 0.0
    %904 = vmatprep.subr.mxu0 0.0
    %905 = vmatpush1.msra.mxu0 0.0
    %906 = vmatprep.subr.mxu0 0.0
    %907 = vmatpush1.msra.mxu0 0.0
    %908 = vmatprep.subr.mxu0 0.0
    %909 = vmatpush1.msra.mxu0 0.0
    %910 = vmatprep.subr.mxu0 0.0
    %911 = vmatpush1.msra.mxu0 0.0
    %912 = vmatprep.subr.mxu0 0.0
    %913 = vmatpush1.msra.mxu0 0.0
    %914 = vmatprep.subr.mxu0 0.0
    %915 = vmatpush1.msra.mxu0 0.0
    %916 = vmatprep.subr.mxu0 0.0
    %917 = vmatpush1.msra.mxu0 0.0
    %918 = vmatprep.subr.mxu0 0.0
    %919 = vmatpush1.msra.mxu0 0.0
    %920 = vmatprep.subr.mxu0 0.0
    %921 = vmatpush1.msra.mxu0 0.0
    %922 = vmatprep.subr.mxu0 0.0
    %923 = vmatpush1.msra.mxu0 0.0
    %924 = vmatprep.subr.mxu0 0.0
    %925 = vmatpush1.msra.mxu0 0.0
    %926 = vmatprep.subr.mxu0 0.0
    %927 = vmatpush1.msra.mxu0 0.0
    %928 = vmatprep.subr.mxu0 0.0
    %929 = vmatpush1.msra.mxu0 0.0
    %930 = vmatprep.subr.mxu0 0.0
    %931 = vmatpush1.msra.mxu0 0.0
    %932 = vmatprep.subr.mxu0 0.0
    %933 = vmatpush1.msra.mxu0 0.0
    %934 = vmatprep.subr.mxu0 0.0
    %935 = vmatpush1.msra.mxu0 0.0
    %936 = vmatprep.subr.mxu0 0.0
    %937 = vmatpush1.msra.mxu0 0.0
    %938 = vmatprep.subr.mxu0 0.0
    %939 = vmatpush1.msra.mxu0 0.0
    %940 = vmatprep.mubr.f32.mxu0 0.0
    %941 = vmatmul.mubr.f32.gmra.mrb[0].mxu0 %v865
    %v942 = vpop.f32.mrb[0].mxu0
    %v943 = vadd.f32 %v830, %v942
    %v944 = vpop.f32.mrb[0].mxu0
    %945 = vmatprep.mubr.f32.mxu0 0.0
    %946 = vmatmul.mubr.f32.gmra.mrb[0].mxu0 %v868
    %v947 = vpop.f32.mrb[0].mxu0
    %v948 = vadd.f32 %v835, %v947
    %v949 = vpop.f32.mrb[0].mxu0
    %950 = vmatprep.mubr.f32.mxu0 0.0
    %951 = vmatmul.mubr.f32.gmra.mrb[0].mxu0 %v871
    %v952 = vpop.f32.mrb[0].mxu0
    %v953 = vadd.f32 %v840, %v952
    %v954 = vpop.f32.mrb[0].mxu0
    %955 = vmatprep.mubr.f32.mxu0 0.0
    %956 = vmatmul.mubr.f32.gmra.mrb[0].mxu0 %v874
    %v957 = vpop.f32.mrb[0].mxu0
    %v958 = vadd.f32 %v845, %v957
    %v959 = vpop.f32.mrb[0].mxu0
    %960 = vdwg.mxu0
    %v961 = vadd.f32 %v160, %v943
    %v962 = vadd.f32 %v165, %v948
    %v963 = vadd.f32 %v170, %v953
    %v964 = vadd.f32 %v175, %v958
    %v965 = vsel %vm178, %v961, 0.0
    %966 = vadd.xlane.f32.xlu0 %v965
    %v967 = vpop.xlane.xlu0 %966
    %v968 = vsel %vm178, %v962, 0.0
    %969 = vadd.xlane.f32.xlu0 %v968
    %v970 = vpop.xlane.xlu0 %969
    %v971 = vsel %vm178, %v963, 0.0
    %972 = vadd.xlane.f32.xlu0 %v971
    %v973 = vpop.xlane.xlu0 %972
    %v974 = vsel %vm178, %v964, 0.0
    %975 = vadd.xlane.f32.xlu0 %v974
    %v976 = vpop.xlane.xlu0 %975
    %v977 = vmul.f32 %v967, %v191
    %v978 = vmul.f32 %v970, %v191
    %v979 = vmul.f32 %v973, %v191
    %v980 = vmul.f32 %v976, %v191
    %v981 = vmul.f32 %v961, %v961
    %v982 = vmul.f32 %v962, %v962
    %v983 = vmul.f32 %v963, %v963
    %v984 = vmul.f32 %v964, %v964
    %v985 = vsel %vm178, %v981, 0.0
    %986 = vadd.xlane.f32.xlu0 %v985
    %v987 = vpop.xlane.xlu0 %986
    %v988 = vsel %vm178, %v982, 0.0
    %989 = vadd.xlane.f32.xlu0 %v988
    %v990 = vpop.xlane.xlu0 %989
    %v991 = vsel %vm178, %v983, 0.0
    %992 = vadd.xlane.f32.xlu0 %v991
    %v993 = vpop.xlane.xlu0 %992
    %v994 = vsel %vm178, %v984, 0.0
    %995 = vadd.xlane.f32.xlu0 %v994
    %v996 = vpop.xlane.xlu0 %995
    %v997 = vmul.f32 %v987, %v191
    %v998 = vmul.f32 %v990, %v191
    %v999 = vmul.f32 %v993, %v191
    %v1000 = vmul.f32 %v996, %v191
    %v1001 = vmul.f32 %v977, %v977
    %v1002 = vmul.f32 %v978, %v978
    %v1003 = vmul.f32 %v979, %v979
    %v1004 = vmul.f32 %v980, %v980
    %v1005 = vsub.f32 %v997, %v1001
    %v1006 = vsub.f32 %v998, %v1002
    %v1007 = vsub.f32 %v999, %v1003
    %v1008 = vsub.f32 %v1000, %v1004
    %v1009 = vsub.f32 %v961, %v977
    %v1010 = vsub.f32 %v962, %v978
    %v1011 = vsub.f32 %v963, %v979
    %v1012 = vsub.f32 %v964, %v980
    %v1013 = vadd.f32 %v1005, 1e-05
    %v1014 = vadd.f32 %v1006, 1e-05
    %v1015 = vadd.f32 %v1007, 1e-05
    %v1016 = vadd.f32 %v1008, 1e-05
    %v1017 = vrsqrt.pop %v1013
    %v1018 = vrsqrt.pop %v1014
    %v1019 = vrsqrt.pop %v1015
    %v1020 = vrsqrt.pop %v1016
    %v1021 = vmul.f32 %v1009, %v1017
    %v1022 = vmul.f32 %v1010, %v1018
    %v1023 = vmul.f32 %v1011, %v1019
    %v1024 = vmul.f32 %v1012, %v1020
    %v1025 = vlaneseq
    %v1026 = vshrl.u32 %v1025, 7
    %v1027 = vsub.s32 2, %v1026
    %v1028 = vrot.slane %v41, %v1027
    %1030 = vrot.lane.b32.xlu0 %v1028, 64
    %v1031 = vpop.permute.xlu0 %1030
    %v1033 = vmul.f32 %v1021, %v1031
    %v1034 = vmul.f32 %v1022, %v1031
    %v1035 = vmul.f32 %v1023, %v1031
    %v1036 = vmul.f32 %v1024, %v1031
    %v1037 = vlaneseq
    %v1038 = vshrl.u32 %v1037, 7
    %v1039 = vsub.s32 3, %v1038
    %v1040 = vrot.slane %v41, %v1039
    %1042 = vrot.lane.b32.xlu0 %v1040, 64
    %v1043 = vpop.permute.xlu0 %1042
    %v1045 = vadd.f32 %v1033, %v1043
    %v1046 = vadd.f32 %v1034, %v1043
    %v1047 = vadd.f32 %v1035, %v1043
    %v1048 = vadd.f32 %v1036, %v1043
    %v1049 = vlaneseq
    %v1050 = vshrl.u32 %v1049, 7
    %v1051 = vsub.s32 0, %v1050
    %v1052 = vrot.slane %v28, %v1051
    %v1054 = vsel %vm178, %v1045, 0
    %v1057 = vsel %vm178, %v1046, 0
    %v1060 = vsel %vm178, %v1047, 0
    %v1063 = vsel %vm178, %v1048, 0
    %1065 = vmatprep.subr.mxu0 0.0
    %1066 = vmatpush1.msra.mxu0 %v20
    %1067 = vmatprep.subr.mxu0 0.0
    %1068 = vmatpush1.msra.mxu0 %v21
    %1069 = vmatprep.subr.mxu0 0.0
    %1070 = vmatpush1.msra.mxu0 %v22
    %1071 = vmatprep.subr.mxu0 0.0
    %1072 = vmatpush1.msra.mxu0 %v23
    %1073 = vmatprep.subr.mxu0 0.0
    %1074 = vmatpush1.msra.mxu0 0.0
    %1075 = vmatprep.subr.mxu0 0.0
    %1076 = vmatpush1.msra.mxu0 0.0
    %1077 = vmatprep.subr.mxu0 0.0
    %1078 = vmatpush1.msra.mxu0 0.0
    %1079 = vmatprep.subr.mxu0 0.0
    %1080 = vmatpush1.msra.mxu0 0.0
    %1081 = vmatprep.subr.mxu0 0.0
    %1082 = vmatpush1.msra.mxu0 0.0
    %1083 = vmatprep.subr.mxu0 0.0
    %1084 = vmatpush1.msra.mxu0 0.0
    %1085 = vmatprep.subr.mxu0 0.0
    %1086 = vmatpush1.msra.mxu0 0.0
    %1087 = vmatprep.subr.mxu0 0.0
    %1088 = vmatpush1.msra.mxu0 0.0
    %1089 = vmatprep.subr.mxu0 0.0
    %1090 = vmatpush1.msra.mxu0 0.0
    %1091 = vmatprep.subr.mxu0 0.0
    %1092 = vmatpush1.msra.mxu0 0.0
    %1093 = vmatprep.subr.mxu0 0.0
    %1094 = vmatpush1.msra.mxu0 0.0
    %1095 = vmatprep.subr.mxu0 0.0
    %1096 = vmatpush1.msra.mxu0 0.0
    %1097 = vmatprep.subr.mxu0 0.0
    %1098 = vmatpush1.msra.mxu0 0.0
    %1099 = vmatprep.subr.mxu0 0.0
    %1100 = vmatpush1.msra.mxu0 0.0
    %1101 = vmatprep.subr.mxu0 0.0
    %1102 = vmatpush1.msra.mxu0 0.0
    %1103 = vmatprep.subr.mxu0 0.0
    %1104 = vmatpush1.msra.mxu0 0.0
    %1105 = vmatprep.subr.mxu0 0.0
    %1106 = vmatpush1.msra.mxu0 0.0
    %1107 = vmatprep.subr.mxu0 0.0
    %1108 = vmatpush1.msra.mxu0 0.0
    %1109 = vmatprep.subr.mxu0 0.0
    %1110 = vmatpush1.msra.mxu0 0.0
    %1111 = vmatprep.subr.mxu0 0.0
    %1112 = vmatpush1.msra.mxu0 0.0
    %1113 = vmatprep.subr.mxu0 0.0
    %1114 = vmatpush1.msra.mxu0 0.0
    %1115 = vmatprep.subr.mxu0 0.0
    %1116 = vmatpush1.msra.mxu0 0.0
    %1117 = vmatprep.subr.mxu0 0.0
    %1118 = vmatpush1.msra.mxu0 0.0
    %1119 = vmatprep.subr.mxu0 0.0
    %1120 = vmatpush1.msra.mxu0 0.0
    %1121 = vmatprep.subr.mxu0 0.0
    %1122 = vmatpush1.msra.mxu0 0.0
    %1123 = vmatprep.subr.mxu0 0.0
    %1124 = vmatpush1.msra.mxu0 0.0
    %1125 = vmatprep.subr.mxu0 0.0
    %1126 = vmatpush1.msra.mxu0 0.0
    %1127 = vmatprep.subr.mxu0 0.0
    %1128 = vmatpush1.msra.mxu0 0.0
    %1129 = vmatprep.mubr.f32.mxu0 0.0
    %1130 = vmatmul.mubr.f32.gmra.mrb[0].mxu0 %v1054
    %v1131 = vpop.f32.mrb[0].mxu0
    %v1132 = vadd.f32 %v1052, %v1131
    %v1133 = vpop.f32.mrb[0].mxu0
    %1134 = vmatprep.mubr.f32.mxu0 0.0
    %1135 = vmatmul.mubr.f32.gmra.mrb[0].mxu0 %v1057
    %v1136 = vpop.f32.mrb[0].mxu0
    %v1137 = vadd.f32 %v1052, %v1136
    %v1138 = vpop.f32.mrb[0].mxu0
    %1139 = vmatprep.mubr.f32.mxu0 0.0
    %1140 = vmatmul.mubr.f32.gmra.mrb[0].mxu0 %v1060
    %v1141 = vpop.f32.mrb[0].mxu0
    %v1142 = vadd.f32 %v1052, %v1141
    %v1143 = vpop.f32.mrb[0].mxu0
    %1144 = vmatprep.mubr.f32.mxu0 0.0
    %1145 = vmatmul.mubr.f32.gmra.mrb[0].mxu0 %v1063
    %v1146 = vpop.f32.mrb[0].mxu0
    %v1147 = vadd.f32 %v1052, %v1146
    %v1148 = vpop.f32.mrb[0].mxu0
    %1149 = vdwg.mxu0
    %v1150 = vmul.f32 %v1132, 0.5
    %v1151 = vmul.f32 %v1137, 0.5
    %v1152 = vmul.f32 %v1142, 0.5
    %v1153 = vmul.f32 %v1147, 0.5
    %v1154 = vmul.f32 %v1132, 0.044715
    %v1155 = vmul.f32 %v1137, 0.044715
    %v1156 = vmul.f32 %v1142, 0.044715
    %v1157 = vmul.f32 %v1147, 0.044715
    %v1158 = vmul.f32 %v1154, %v1132
    %v1159 = vmul.f32 %v1155, %v1137
    %v1160 = vmul.f32 %v1156, %v1142
    %v1161 = vmul.f32 %v1157, %v1147
    %v1162 = vmul.f32 %v1158, %v1132
    %v1163 = vmul.f32 %v1159, %v1137
    %v1164 = vmul.f32 %v1160, %v1142
    %v1165 = vmul.f32 %v1161, %v1147
    %v1166 = vadd.f32 %v1132, %v1162
    %v1167 = vadd.f32 %v1137, %v1163
    %v1168 = vadd.f32 %v1142, %v1164
    %v1169 = vadd.f32 %v1147, %v1165
    %v1170 = vmul.f32 %v1166, 0.7978846
    %v1171 = vmul.f32 %v1167, 0.7978846
    %v1172 = vmul.f32 %v1168, 0.7978846
    %v1173 = vmul.f32 %v1169, 0.7978846
    %v1174 = vtanh.pop %v1170
    %v1175 = vtanh.pop %v1171
    %v1176 = vtanh.pop %v1172
    %v1177 = vtanh.pop %v1173
    %v1178 = vadd.f32 %v1174, 1.0
    %v1179 = vadd.f32 %v1175, 1.0
    %v1180 = vadd.f32 %v1176, 1.0
    %v1181 = vadd.f32 %v1177, 1.0
    %v1182 = vmul.f32 %v1150, %v1178
    %v1183 = vmul.f32 %v1151, %v1179
    %v1184 = vmul.f32 %v1152, %v1180
    %v1185 = vmul.f32 %v1153, %v1181
    %1186 = vmatprep.subr.mxu0 0.0
    %1187 = vmatpush1.xpose.msra.mxu0 %v24
    %1188 = vmatprep.subr.mxu0 0.0
    %1189 = vmatpush1.xpose.msra.mxu0 %v25
    %1190 = vmatprep.subr.mxu0 0.0
    %1191 = vmatpush1.xpose.msra.mxu0 %v26
    %1192 = vmatprep.subr.mxu0 0.0
    %1193 = vmatpush1.xpose.msra.mxu0 %v27
    %1194 = vmatprep.subr.mxu0 0.0
    %1195 = vmatpush1.xpose.msra.mxu0 0.0
    %1196 = vmatprep.subr.mxu0 0.0
    %1197 = vmatpush1.xpose.msra.mxu0 0.0
    %1198 = vmatprep.subr.mxu0 0.0
    %1199 = vmatpush1.xpose.msra.mxu0 0.0
    %1200 = vmatprep.subr.mxu0 0.0
    %1201 = vmatpush1.xpose.msra.mxu0 0.0
    %1202 = vmatprep.subr.mxu0 0.0
    %1203 = vmatpush1.xpose.msra.mxu0 0.0
    %1204 = vmatprep.subr.mxu0 0.0
    %1205 = vmatpush1.xpose.msra.mxu0 0.0
    %1206 = vmatprep.subr.mxu0 0.0
    %1207 = vmatpush1.xpose.msra.mxu0 0.0
    %1208 = vmatprep.subr.mxu0 0.0
    %1209 = vmatpush1.xpose.msra.mxu0 0.0
    %1210 = vmatprep.subr.mxu0 0.0
    %1211 = vmatpush1.xpose.msra.mxu0 0.0
    %1212 = vmatprep.subr.mxu0 0.0
    %1213 = vmatpush1.xpose.msra.mxu0 0.0
    %1214 = vmatprep.subr.mxu0 0.0
    %1215 = vmatpush1.xpose.msra.mxu0 0.0
    %1216 = vmatprep.subr.mxu0 0.0
    %1217 = vmatpush1.xpose.msra.mxu0 0.0
    %1218 = vmatprep.subr.mxu0 0.0
    %1219 = vmatpush1.xpose.msra.mxu0 0.0
    %1220 = vmatprep.subr.mxu0 0.0
    %1221 = vmatpush1.xpose.msra.mxu0 0.0
    %1222 = vmatprep.subr.mxu0 0.0
    %1223 = vmatpush1.xpose.msra.mxu0 0.0
    %1224 = vmatprep.subr.mxu0 0.0
    %1225 = vmatpush1.xpose.msra.mxu0 0.0
    %1226 = vmatprep.subr.mxu0 0.0
    %1227 = vmatpush1.xpose.msra.mxu0 0.0
    %1228 = vmatprep.subr.mxu0 0.0
    %1229 = vmatpush1.xpose.msra.mxu0 0.0
    %1230 = vmatprep.subr.mxu0 0.0
    %1231 = vmatpush1.xpose.msra.mxu0 0.0
    %1232 = vmatprep.subr.mxu0 0.0
    %1233 = vmatpush1.xpose.msra.mxu0 0.0
    %1234 = vmatprep.subr.mxu0 0.0
    %1235 = vmatpush1.xpose.msra.mxu0 0.0
    %1236 = vmatprep.subr.mxu0 0.0
    %1237 = vmatpush1.xpose.msra.mxu0 0.0
    %1238 = vmatprep.subr.mxu0 0.0
    %1239 = vmatpush1.xpose.msra.mxu0 0.0
    %1240 = vmatprep.subr.mxu0 0.0
    %1241 = vmatpush1.xpose.msra.mxu0 0.0
    %1242 = vmatprep.subr.mxu0 0.0
    %1243 = vmatpush1.xpose.msra.mxu0 0.0
    %1244 = vmatprep.subr.mxu0 0.0
    %1245 = vmatpush1.xpose.msra.mxu0 0.0
    %1246 = vmatprep.subr.mxu0 0.0
    %1247 = vmatpush1.xpose.msra.mxu0 0.0
    %1248 = vmatprep.subr.mxu0 0.0
    %1249 = vmatpush1.xpose.msra.mxu0 0.0
    %1250 = vmatprep.mubr.f32.mxu0 0.0
    %1251 = vmatmul.mubr.f32.gmra.mrb[0].mxu0 %v1182
    %v1252 = vpop.f32.mrb[0].mxu0
    %v1253 = vadd.f32 0.0, %v1252
    %v1254 = vpop.f32.mrb[0].mxu0
    %1255 = vmatprep.mubr.f32.mxu0 0.0
    %1256 = vmatmul.mubr.f32.gmra.mrb[0].mxu0 %v1183
    %v1257 = vpop.f32.mrb[0].mxu0
    %v1258 = vadd.f32 0.0, %v1257
    %v1259 = vpop.f32.mrb[0].mxu0
    %1260 = vmatprep.mubr.f32.mxu0 0.0
    %1261 = vmatmul.mubr.f32.gmra.mrb[0].mxu0 %v1184
    %v1262 = vpop.f32.mrb[0].mxu0
    %v1263 = vadd.f32 0.0, %v1262
    %v1264 = vpop.f32.mrb[0].mxu0
    %1265 = vmatprep.mubr.f32.mxu0 0.0
    %1266 = vmatmul.mubr.f32.gmra.mrb[0].mxu0 %v1185
    %v1267 = vpop.f32.mrb[0].mxu0
    %v1268 = vadd.f32 0.0, %v1267
    %v1269 = vpop.f32.mrb[0].mxu0
    %1270 = vdwg.mxu0
    %v1271 = vadd.f32 %v961, %v1253
    %v1272 = vadd.f32 %v962, %v1258
    %v1273 = vadd.f32 %v963, %v1263
    %v1274 = vadd.f32 %v964, %v1268
    %v1275 = vlaneseq
    %v1276 = vshrl.u32 %v1275, 7
    %v1277 = vsub.s32 6, %v1276
    %v1278 = vrot.slane %v41, %v1277
    %1280 = vrot.lane.b32.xlu0 %v1278, 64
    %v1281 = vpop.permute.xlu0 %1280
    %v1283 = vadd.f32 %v1271, %v1281
    %v1284 = vadd.f32 %v1272, %v1281
    %v1285 = vadd.f32 %v1273, %v1281
    %v1286 = vadd.f32 %v1274, %v1281
    %v1287 = vsel %vm178, %v1283, 0.0
    %1288 = vadd.xlane.f32.xlu0 %v1287
    %v1289 = vpop.xlane.xlu0 %1288
    %v1290 = vsel %vm178, %v1284, 0.0
    %1291 = vadd.xlane.f32.xlu0 %v1290
    %v1292 = vpop.xlane.xlu0 %1291
    %v1293 = vsel %vm178, %v1285, 0.0
    %1294 = vadd.xlane.f32.xlu0 %v1293
    %v1295 = vpop.xlane.xlu0 %1294
    %v1296 = vsel %vm178, %v1286, 0.0
    %1297 = vadd.xlane.f32.xlu0 %v1296
    %v1298 = vpop.xlane.xlu0 %1297
    %v1299 = vmul.f32 %v1289, %v191
    %v1300 = vmul.f32 %v1292, %v191
    %v1301 = vmul.f32 %v1295, %v191
    %v1302 = vmul.f32 %v1298, %v191
    %v1303 = vmul.f32 %v1283, %v1283
    %v1304 = vmul.f32 %v1284, %v1284
    %v1305 = vmul.f32 %v1285, %v1285
    %v1306 = vmul.f32 %v1286, %v1286
    %v1307 = vsel %vm178, %v1303, 0.0
    %1308 = vadd.xlane.f32.xlu0 %v1307
    %v1309 = vpop.xlane.xlu0 %1308
    %v1310 = vsel %vm178, %v1304, 0.0
    %1311 = vadd.xlane.f32.xlu0 %v1310
    %v1312 = vpop.xlane.xlu0 %1311
    %v1313 = vsel %vm178, %v1305, 0.0
    %1314 = vadd.xlane.f32.xlu0 %v1313
    %v1315 = vpop.xlane.xlu0 %1314
    %v1316 = vsel %vm178, %v1306, 0.0
    %1317 = vadd.xlane.f32.xlu0 %v1316
    %v1318 = vpop.xlane.xlu0 %1317
    %v1319 = vmul.f32 %v1309, %v191
    %v1320 = vmul.f32 %v1312, %v191
    %v1321 = vmul.f32 %v1315, %v191
    %v1322 = vmul.f32 %v1318, %v191
    %v1323 = vmul.f32 %v1299, %v1299
    %v1324 = vmul.f32 %v1300, %v1300
    %v1325 = vmul.f32 %v1301, %v1301
    %v1326 = vmul.f32 %v1302, %v1302
    %v1327 = vsub.f32 %v1319, %v1323
    %v1328 = vsub.f32 %v1320, %v1324
    %v1329 = vsub.f32 %v1321, %v1325
    %v1330 = vsub.f32 %v1322, %v1326
    %v1331 = vsub.f32 %v1283, %v1299
    %v1332 = vsub.f32 %v1284, %v1300
    %v1333 = vsub.f32 %v1285, %v1301
    %v1334 = vsub.f32 %v1286, %v1302
    %v1335 = vadd.f32 %v1327, 1e-05
    %v1336 = vadd.f32 %v1328, 1e-05
    %v1337 = vadd.f32 %v1329, 1e-05
    %v1338 = vadd.f32 %v1330, 1e-05
    %v1339 = vrsqrt.pop %v1335
    %v1340 = vrsqrt.pop %v1336
    %v1341 = vrsqrt.pop %v1337
    %v1342 = vrsqrt.pop %v1338
    %v1343 = vmul.f32 %v1331, %v1339
    %v1344 = vmul.f32 %v1332, %v1340
    %v1345 = vmul.f32 %v1333, %v1341
    %v1346 = vmul.f32 %v1334, %v1342
    %v1347 = vlaneseq
    %v1348 = vshrl.u32 %v1347, 7
    %v1349 = vsub.s32 4, %v1348
    %v1350 = vrot.slane %v41, %v1349
    %1352 = vrot.lane.b32.xlu0 %v1350, 64
    %v1353 = vpop.permute.xlu0 %1352
    %v1355 = vmul.f32 %v1343, %v1353
    %v1356 = vmul.f32 %v1344, %v1353
    %v1357 = vmul.f32 %v1345, %v1353
    %v1358 = vmul.f32 %v1346, %v1353
    %v1359 = vlaneseq
    %v1360 = vshrl.u32 %v1359, 7
    %v1361 = vsub.s32 5, %v1360
    %v1362 = vrot.slane %v41, %v1361
    %1364 = vrot.lane.b32.xlu0 %v1362, 64
    %v1365 = vpop.permute.xlu0 %1364
    %v1367 = vadd.f32 %v1355, %v1365
    %v1368 = vadd.f32 %v1356, %v1365
    %v1369 = vadd.f32 %v1357, %v1365
    %v1370 = vadd.f32 %v1358, %v1365
    %1372 = vrot.lane.b32.xlu0 %v42, 64
    %v1373 = vpop.permute.xlu0 %1372
    %v1374 = vsel %vm178, %v1373, 0
    %1376 = vmatprep.subr.mxu0 0.0
    %1377 = vmatpush1.msra.mxu0 %v1367
    %1378 = vmatprep.subr.mxu0 0.0
    %1379 = vmatpush1.msra.mxu0 %v1368
    %1380 = vmatprep.subr.mxu0 0.0
    %1381 = vmatpush1.msra.mxu0 %v1369
    %1382 = vmatprep.subr.mxu0 0.0
    %1383 = vmatpush1.msra.mxu0 %v1370
    %1384 = vmatprep.subr.mxu0 0.0
    %1385 = vmatpush1.msra.mxu0 0.0
    %1386 = vmatprep.subr.mxu0 0.0
    %1387 = vmatpush1.msra.mxu0 0.0
    %1388 = vmatprep.subr.mxu0 0.0
    %1389 = vmatpush1.msra.mxu0 0.0
    %1390 = vmatprep.subr.mxu0 0.0
    %1391 = vmatpush1.msra.mxu0 0.0
    %1392 = vmatprep.subr.mxu0 0.0
    %1393 = vmatpush1.msra.mxu0 0.0
    %1394 = vmatprep.subr.mxu0 0.0
    %1395 = vmatpush1.msra.mxu0 0.0
    %1396 = vmatprep.subr.mxu0 0.0
    %1397 = vmatpush1.msra.mxu0 0.0
    %1398 = vmatprep.subr.mxu0 0.0
    %1399 = vmatpush1.msra.mxu0 0.0
    %1400 = vmatprep.subr.mxu0 0.0
    %1401 = vmatpush1.msra.mxu0 0.0
    %1402 = vmatprep.subr.mxu0 0.0
    %1403 = vmatpush1.msra.mxu0 0.0
    %1404 = vmatprep.subr.mxu0 0.0
    %1405 = vmatpush1.msra.mxu0 0.0
    %1406 = vmatprep.subr.mxu0 0.0
    %1407 = vmatpush1.msra.mxu0 0.0
    %1408 = vmatprep.subr.mxu0 0.0
    %1409 = vmatpush1.msra.mxu0 0.0
    %1410 = vmatprep.subr.mxu0 0.0
    %1411 = vmatpush1.msra.mxu0 0.0
    %1412 = vmatprep.subr.mxu0 0.0
    %1413 = vmatpush1.msra.mxu0 0.0
    %1414 = vmatprep.subr.mxu0 0.0
    %1415 = vmatpush1.msra.mxu0 0.0
    %1416 = vmatprep.subr.mxu0 0.0
    %1417 = vmatpush1.msra.mxu0 0.0
    %1418 = vmatprep.subr.mxu0 0.0
    %1419 = vmatpush1.msra.mxu0 0.0
    %1420 = vmatprep.subr.mxu0 0.0
    %1421 = vmatpush1.msra.mxu0 0.0
    %1422 = vmatprep.subr.mxu0 0.0
    %1423 = vmatpush1.msra.mxu0 0.0
    %1424 = vmatprep.subr.mxu0 0.0
    %1425 = vmatpush1.msra.mxu0 0.0
    %1426 = vmatprep.subr.mxu0 0.0
    %1427 = vmatpush1.msra.mxu0 0.0
    %1428 = vmatprep.subr.mxu0 0.0
    %1429 = vmatpush1.msra.mxu0 0.0
    %1430 = vmatprep.subr.mxu0 0.0
    %1431 = vmatpush1.msra.mxu0 0.0
    %1432 = vmatprep.subr.mxu0 0.0
    %1433 = vmatpush1.msra.mxu0 0.0
    %1434 = vmatprep.subr.mxu0 0.0
    %1435 = vmatpush1.msra.mxu0 0.0
    %1436 = vmatprep.subr.mxu0 0.0
    %1437 = vmatpush1.msra.mxu0 0.0
    %1438 = vmatprep.subr.mxu0 0.0
    %1439 = vmatpush1.msra.mxu0 0.0
    %1440 = vmatprep.mubr.f32.mxu0 0.0
    %1441 = vmatmul.mubr.f32.gmra.mrb[0].mxu0 %v1374
    %v1442 = vpop.f32.mrb[0].mxu0
    %v1443 = vadd.f32 0.0, %v1442
    %v1444 = vpop.f32.mrb[0].mxu0
    %1445 = vdwg.mxu0
    %vm1446 = vcmask 254976
    %1447 = vst.msk [vmem:[#allocation2] sm:$0x3] %vm1446, %v1443
    // Predicated region
    $region10: #{image_encoder_forward.1} parent=1 // pred_check
      _
    $region11: #{image_encoder_forward.1} parent=1 // pred_check_branch
      %1449 = sbr.rel (0) target = $region13
    $region12: #{image_encoder_forward.1} parent=1 // pred_region
      %s1451 = ssub.s32 32, 32
      %1452 = vsyncadd [#allocation3], %s1451
      %s1454 = sshll.u32 [#allocation2], 4
      %s1455 = int_to_ptr.vmem [resolvable:$true] %s1454
      %1457 = dma.vmem_to_hbm [thread:$0]  %s1455, 32, %s2, [#allocation3]
    $region13: #{image_encoder_forward.1} parent=1 // pred_fallthru
      _
    // Predicated region
    $region14: #{image_encoder_forward.1} parent=1 // pred_check
      _
    $region15: #{image_encoder_forward.1} parent=1 // pred_check_branch
      %1459 = sbr.rel (0) target = $region17
    $region16: #{image_encoder_forward.1} parent=1 // pred_region
      %1460 = dma.done [#allocation3], 32
    $region17: #{image_encoder_forward.1} parent=1 // pred_fallthru
      _
    %1461 = vsyncpa [#allocation3], 1

</llo_original>
